<compile_context>
chip_gen: v7x
topology: tpu7x:2x2x1
jax: 0.10.0
libtpu: 0.0.40
codegen_flags: <defaults>
</compile_context>

<pallas_src>
import jax
import jax.numpy as jnp
from jax import lax
from jax.experimental import pallas as pl
from jax.experimental.pallas import tpu as pltpu

K = 7      # conv kernel size
PAD = 3    # conv padding
TOP = 8    # top halo rows (over-padded so the interior write is sublane-aligned)


def _round_up(n, m):
    return ((n + m - 1) // m) * m


def spatial_attention_kernel(w_ref, x_ref, o_ref, pad_ref):
    # w_ref   : SMEM (2, 49) f32 prefetch weights; row 0 = avg-channel weights
    #           (already scaled by 1/C), row 1 = max-channel weights.
    # x_ref   : VMEM (BB, C, H, W) unpadded input block.
    # o_ref   : VMEM (BB, H, W) output block.
    # pad_ref : VMEM (2, BB, TOP + H + PAD, W + 2*PAD) stacked padded avg/max maps.
    BB, H, W = o_ref.shape
    C = x_ref.shape[1]
    Wp = W + 2 * PAD

    # ---- Streamed channel reduction: one (BB, H, W) slab at a time. ----------
    # Keeps only two running vregs live (instead of the whole C-block) and lets
    # the vld of slab c+1 overlap the VPU add/max of slab c.
    x0 = x_ref[:, 0].astype(jnp.float32)
    s_map = x0
    m_map = x0
    for c in range(1, C):
        xc = x_ref[:, c].astype(jnp.float32)
        s_map = s_map + xc
        m_map = jnp.maximum(m_map, xc)

    # ---- Halo ring zero + sublane-aligned interior write. --------------------
    # Only the thin ring the conv actually reads is zeroed (a few masked stores),
    # not the full scratch.  Done every step: the scratch is per-core, so gating
    # on program_id(0) == 0 would leave the second TensorCore's halo garbage
    # under megacore sharding.
    pad_ref[:, :, TOP - PAD:TOP, :] = jnp.zeros((2, BB, PAD, Wp), jnp.float32)
    pad_ref[:, :, TOP + H:TOP + H + PAD, :] = jnp.zeros((2, BB, PAD, Wp), jnp.float32)
    pad_ref[:, :, TOP:TOP + H, :PAD] = jnp.zeros((2, BB, H, PAD), jnp.float32)
    pad_ref[:, :, TOP:TOP + H, PAD + W:] = jnp.zeros((2, BB, H, PAD), jnp.float32)
    pad_ref[0, :, TOP:TOP + H, PAD:PAD + W] = s_map   # sublane offset 8 (aligned)
    pad_ref[1, :, TOP:TOP + H, PAD:PAD + W] = m_map

    # ---- 7x7 conv as 49 shifted FMAs per reduced channel. --------------------
    # One stacked strip load per kh (7 total instead of 14); only lane-axis
    # shifts (static last-dim slices -> XLU rotates) inside the kw loop.
    # acc is seeded from the first tap (no zeros + add pass).
    acc = None
    for kh in range(K):
        r0 = TOP - PAD + kh
        strip = pad_ref[:, :, r0:r0 + H, :]            # (2, BB, H, Wp)
        a_strip = strip[0]
        m_strip = strip[1]
        for kw in range(K):
            idx = kh * K + kw
            tap = (w_ref[0, idx] * a_strip[:, :, kw:kw + W]
                   + w_ref[1, idx] * m_strip[:, :, kw:kw + W])
            acc = tap if acc is None else acc + tap

    # Exact sigmoid (exp goes to the EUP slot; accuracy within test tolerance).
    o_ref[...] = jax.nn.sigmoid(acc).astype(o_ref.dtype)


def spatial_attention(x, conv_w, *, batch_block=None, vmem_limit_bytes=None):
    """x: (B, C, H, W), conv_w: (1, 2, 7, 7)  ->  (B, 1, H, W)."""
    B, C, H, W = x.shape
    assert conv_w.shape == (1, 2, K, K)
    Wp = W + 2 * PAD
    Hs = TOP + H + PAD

    itemsize = jnp.dtype(x.dtype).itemsize
    # Padded (8,128)-tile VMEM footprint of a single batch's input/output slab.
    per_b_in = C * _round_up(H, 8) * _round_up(W, 128) * itemsize
    per_b_out = _round_up(H, 8) * _round_up(W, 128) * itemsize

    if batch_block is None:
        # ~4 MiB input-block cap: with 2x double-buffered input + output blocks
        # plus the scratch this stays under the 16 MiB v5e scoped default and
        # well under v7x's 32 MiB scoped / 64 MiB physical VMEM.  (On v6e pass
        # batch_block explicitly to grow toward the HBM roofline.)
        cap = max(1, (4 << 20) // max(per_b_in, 1))
        if B >= 2:
            # Guarantee >= 2 grid steps so v7x megacore has work on both cores.
            cap = min(cap, (B + 1) // 2)
        batch_block = min(B, cap)
    nb = pl.cdiv(B, batch_block)   # ragged last block is masked by Pallas

    scratch_bytes = 2 * batch_block * _round_up(Hs, 8) * _round_up(Wp, 128) * 4
    if vmem_limit_bytes is None:
        need = (2 * batch_block * per_b_in + 2 * batch_block * per_b_out
                + scratch_bytes + (4 << 20))
        vmem_limit_bytes = int(min(64 << 20, max(32 << 20, need)))

    # Fold the 1/C of the channel mean into the avg-channel weights so the
    # kernel only needs jnp sum over C.
    scale = jnp.array([[1.0 / C], [1.0]], jnp.float32)
    w_flat = conv_w.reshape(2, K * K).astype(jnp.float32) * scale

    out = pl.pallas_call(
        spatial_attention_kernel,
        out_shape=jax.ShapeDtypeStruct((B, H, W), x.dtype),
        grid_spec=pltpu.PrefetchScalarGridSpec(
            num_scalar_prefetch=1,
            grid=(nb,),
            in_specs=[
                pl.BlockSpec((batch_block, C, H, W),
                             lambda b, w_sref: (b, 0, 0, 0)),
            ],
            out_specs=pl.BlockSpec((batch_block, H, W),
                                   lambda b, w_sref: (b, 0, 0)),
            scratch_shapes=[
                pltpu.VMEM((2, batch_block, Hs, Wp), jnp.float32),
            ],
        ),
        compiler_params=pltpu.CompilerParams(
            dimension_semantics=("parallel",),
            vmem_limit_bytes=vmem_limit_bytes),
    )(w_flat, x)

    return out.reshape(B, 1, H, W)


if __name__ == "__main__":
    key = jax.random.PRNGKey(0)
    kx, kw = jax.random.split(key)

    B, C, H, W = 2, 4, 16, 16
    x = jax.random.normal(kx, (B, C, H, W), dtype=jnp.float32)

    # Deterministic conv weight init (uniform in +-1/sqrt(fan_in), like PyTorch).
    fan_in = 2 * K * K
    bound = 1.0 / (fan_in ** 0.5)
    conv_w = jax.random.uniform(kw, (1, 2, K, K), jnp.float32, -bound, bound)

    out = jax.block_until_ready(spatial_attention(x, conv_w))
    assert out.shape == (B, 1, H, W)

    # Pure-JAX reference matching the PyTorch forward.
    avg = jnp.mean(x, axis=1, keepdims=True)
    mx = jnp.max(x, axis=1, keepdims=True)
    xc = jnp.concatenate([avg, mx], axis=1)
    ref = lax.conv_general_dilated(
        xc, conv_w, window_strides=(1, 1), padding=((PAD, PAD), (PAD, PAD)),
        dimension_numbers=("NCHW", "OIHW", "NCHW"))
    ref = jax.nn.sigmoid(ref)

    assert jnp.allclose(out, ref, atol=2e-5, rtol=1e-4), (
        float(jnp.max(jnp.abs(out - ref))))
    print("KERNEL_OK")
</pallas_src>

<mosaic_0001>
module attributes {stable_mosaic.version = 11 : i64} {
  func.func @spatial_attention_kernel(%arg0: i32, %arg1: memref<2x49xf32, #tpu.memory_space<smem>>, %arg2: memref<1x4x16x16xf32, #tpu.memory_space<vmem>>, %arg3: memref<1x16x16xf32, #tpu.memory_space<vmem>>, %arg4: memref<2x1x27x22xf32, #tpu.memory_space<vmem>>) attributes {dimension_semantics = [#tpu.dimension_semantics<parallel>], iteration_bounds = array<i64: 2>, scalar_prefetch = 1 : i64, scratch_operands = 1 : i64, tpu.core_type = #tpu.core_type<tc>, window_params = [{transform_indices = @transform_0, window_bounds = array<i64: 1, 4, 16, 16>}, {transform_indices = @transform_1, window_bounds = array<i64: 1, 16, 16>}]} {
    %c0 = arith.constant 0 : index
    %c0_0 = arith.constant 0 : index
    %c0_1 = arith.constant 0 : index
    %c0_2 = arith.constant 0 : index
    %0 = vector.load %arg2[%c0, %c0_0, %c0_1, %c0_2] : memref<1x4x16x16xf32, #tpu.memory_space<vmem>>, vector<1x1x16x16xf32>
    %1 = vector.shape_cast %0 : vector<1x1x16x16xf32> to vector<1x16x16xf32>
    %c0_3 = arith.constant 0 : index
    %c1 = arith.constant 1 : index
    %c0_4 = arith.constant 0 : index
    %c0_5 = arith.constant 0 : index
    %2 = vector.load %arg2[%c0_3, %c1, %c0_4, %c0_5] : memref<1x4x16x16xf32, #tpu.memory_space<vmem>>, vector<1x1x16x16xf32>
    %3 = vector.shape_cast %2 : vector<1x1x16x16xf32> to vector<1x16x16xf32>
    %4 = arith.addf %1, %3 : vector<1x16x16xf32>
    %5 = arith.maximumf %1, %3 : vector<1x16x16xf32>
    %c0_6 = arith.constant 0 : index
    %c2 = arith.constant 2 : index
    %c0_7 = arith.constant 0 : index
    %c0_8 = arith.constant 0 : index
    %6 = vector.load %arg2[%c0_6, %c2, %c0_7, %c0_8] : memref<1x4x16x16xf32, #tpu.memory_space<vmem>>, vector<1x1x16x16xf32>
    %7 = vector.shape_cast %6 : vector<1x1x16x16xf32> to vector<1x16x16xf32>
    %8 = arith.addf %4, %7 : vector<1x16x16xf32>
    %9 = arith.maximumf %5, %7 : vector<1x16x16xf32>
    %c0_9 = arith.constant 0 : index
    %c3 = arith.constant 3 : index
    %c0_10 = arith.constant 0 : index
    %c0_11 = arith.constant 0 : index
    %10 = vector.load %arg2[%c0_9, %c3, %c0_10, %c0_11] : memref<1x4x16x16xf32, #tpu.memory_space<vmem>>, vector<1x1x16x16xf32>
    %11 = vector.shape_cast %10 : vector<1x1x16x16xf32> to vector<1x16x16xf32>
    %12 = arith.addf %8, %11 : vector<1x16x16xf32>
    %13 = arith.maximumf %9, %11 : vector<1x16x16xf32>
    %cst = arith.constant 0.000000e+00 : f32
    %14 = vector.broadcast %cst : f32 to vector<2x1x3x22xf32>
    %c0_12 = arith.constant 0 : index
    %c0_13 = arith.constant 0 : index
    %c5 = arith.constant 5 : index
    %c0_14 = arith.constant 0 : index
    %15 = vector.load %arg4[%c0_12, %c0_13, %c5, %c0_14] : memref<2x1x27x22xf32, #tpu.memory_space<vmem>>, vector<2x1x3x22xf32>
    tpu.vector_store %arg4[%c0_12, %c0_13, %c5, %c0_14], %14 {strides = array<i32>} : memref<2x1x27x22xf32, #tpu.memory_space<vmem>>, vector<2x1x3x22xf32>,
    %cst_15 = arith.constant 0.000000e+00 : f32
    %16 = vector.broadcast %cst_15 : f32 to vector<2x1x3x22xf32>
    %c0_16 = arith.constant 0 : index
    %c0_17 = arith.constant 0 : index
    %c24 = arith.constant 24 : index
    %c0_18 = arith.constant 0 : index
    %17 = vector.load %arg4[%c0_16, %c0_17, %c24, %c0_18] : memref<2x1x27x22xf32, #tpu.memory_space<vmem>>, vector<2x1x3x22xf32>
    tpu.vector_store %arg4[%c0_16, %c0_17, %c24, %c0_18], %16 {strides = array<i32>} : memref<2x1x27x22xf32, #tpu.memory_space<vmem>>, vector<2x1x3x22xf32>,
    %cst_19 = arith.constant 0.000000e+00 : f32
    %18 = vector.broadcast %cst_19 : f32 to vector<2x1x16x3xf32>
    %c0_20 = arith.constant 0 : index
    %c0_21 = arith.constant 0 : index
    %c8 = arith.constant 8 : index
    %c0_22 = arith.constant 0 : index
    %19 = vector.load %arg4[%c0_20, %c0_21, %c8, %c0_22] : memref<2x1x27x22xf32, #tpu.memory_space<vmem>>, vector<2x1x16x3xf32>
    tpu.vector_store %arg4[%c0_20, %c0_21, %c8, %c0_22], %18 {strides = array<i32>} : memref<2x1x27x22xf32, #tpu.memory_space<vmem>>, vector<2x1x16x3xf32>,
    %cst_23 = arith.constant 0.000000e+00 : f32
    %20 = vector.broadcast %cst_23 : f32 to vector<2x1x16x3xf32>
    %c0_24 = arith.constant 0 : index
    %c0_25 = arith.constant 0 : index
    %c8_26 = arith.constant 8 : index
    %c19 = arith.constant 19 : index
    %21 = vector.load %arg4[%c0_24, %c0_25, %c8_26, %c19] : memref<2x1x27x22xf32, #tpu.memory_space<vmem>>, vector<2x1x16x3xf32>
    tpu.vector_store %arg4[%c0_24, %c0_25, %c8_26, %c19], %20 {strides = array<i32>} : memref<2x1x27x22xf32, #tpu.memory_space<vmem>>, vector<2x1x16x3xf32>,
    %c0_27 = arith.constant 0 : index
    %c0_28 = arith.constant 0 : index
    %c8_29 = arith.constant 8 : index
    %c3_30 = arith.constant 3 : index
    %22 = vector.load %arg4[%c0_27, %c0_28, %c8_29, %c3_30] : memref<2x1x27x22xf32, #tpu.memory_space<vmem>>, vector<1x1x16x16xf32>
    %23 = vector.shape_cast %22 : vector<1x1x16x16xf32> to vector<1x16x16xf32>
    %24 = vector.shape_cast %12 : vector<1x16x16xf32> to vector<1x1x16x16xf32>
    tpu.vector_store %arg4[%c0_27, %c0_28, %c8_29, %c3_30], %24 {strides = array<i32>} : memref<2x1x27x22xf32, #tpu.memory_space<vmem>>, vector<1x1x16x16xf32>,
    %c1_31 = arith.constant 1 : index
    %c0_32 = arith.constant 0 : index
    %c8_33 = arith.constant 8 : index
    %c3_34 = arith.constant 3 : index
    %25 = vector.load %arg4[%c1_31, %c0_32, %c8_33, %c3_34] : memref<2x1x27x22xf32, #tpu.memory_space<vmem>>, vector<1x1x16x16xf32>
    %26 = vector.shape_cast %25 : vector<1x1x16x16xf32> to vector<1x16x16xf32>
    %27 = vector.shape_cast %13 : vector<1x16x16xf32> to vector<1x1x16x16xf32>
    tpu.vector_store %arg4[%c1_31, %c0_32, %c8_33, %c3_34], %27 {strides = array<i32>} : memref<2x1x27x22xf32, #tpu.memory_space<vmem>>, vector<1x1x16x16xf32>,
    %c0_35 = arith.constant 0 : index
    %c0_36 = arith.constant 0 : index
    %c5_37 = arith.constant 5 : index
    %c0_38 = arith.constant 0 : index
    %28 = vector.load %arg4[%c0_35, %c0_36, %c5_37, %c0_38] : memref<2x1x27x22xf32, #tpu.memory_space<vmem>>, vector<2x1x16x22xf32>
    %29 = vector.extract_strided_slice %28 {offsets = [0, 0, 0, 0], sizes = [1, 1, 16, 22], strides = [1, 1, 1, 1]} : vector<2x1x16x22xf32> to vector<1x1x16x22xf32>
    %30 = vector.shape_cast %29 : vector<1x1x16x22xf32> to vector<1x16x22xf32>
    %31 = vector.extract_strided_slice %28 {offsets = [1, 0, 0, 0], sizes = [1, 1, 16, 22], strides = [1, 1, 1, 1]} : vector<2x1x16x22xf32> to vector<1x1x16x22xf32>
    %32 = vector.shape_cast %31 : vector<1x1x16x22xf32> to vector<1x16x22xf32>
    %c0_39 = arith.constant 0 : index
    %c0_40 = arith.constant 0 : index
    %33 = memref.load %arg1[%c0_39, %c0_40] : memref<2x49xf32, #tpu.memory_space<smem>>
    %34 = vector.extract_strided_slice %30 {offsets = [0, 0, 0], sizes = [1, 16, 16], strides = [1, 1, 1]} : vector<1x16x22xf32> to vector<1x16x16xf32>
    %35 = vector.broadcast %33 : f32 to vector<1x16x16xf32>
    %36 = arith.mulf %35, %34 : vector<1x16x16xf32>
    %c1_41 = arith.constant 1 : index
    %c0_42 = arith.constant 0 : index
    %37 = memref.load %arg1[%c1_41, %c0_42] : memref<2x49xf32, #tpu.memory_space<smem>>
    %38 = vector.extract_strided_slice %32 {offsets = [0, 0, 0], sizes = [1, 16, 16], strides = [1, 1, 1]} : vector<1x16x22xf32> to vector<1x16x16xf32>
    %39 = vector.broadcast %37 : f32 to vector<1x16x16xf32>
    %40 = arith.mulf %39, %38 : vector<1x16x16xf32>
    %41 = arith.addf %36, %40 : vector<1x16x16xf32>
    %c0_43 = arith.constant 0 : index
    %c1_44 = arith.constant 1 : index
    %42 = memref.load %arg1[%c0_43, %c1_44] : memref<2x49xf32, #tpu.memory_space<smem>>
    %43 = vector.extract_strided_slice %30 {offsets = [0, 0, 1], sizes = [1, 16, 16], strides = [1, 1, 1]} : vector<1x16x22xf32> to vector<1x16x16xf32>
    %44 = vector.broadcast %42 : f32 to vector<1x16x16xf32>
    %45 = arith.mulf %44, %43 : vector<1x16x16xf32>
    %c1_45 = arith.constant 1 : index
    %c1_46 = arith.constant 1 : index
    %46 = memref.load %arg1[%c1_45, %c1_46] : memref<2x49xf32, #tpu.memory_space<smem>>
    %47 = vector.extract_strided_slice %32 {offsets = [0, 0, 1], sizes = [1, 16, 16], strides = [1, 1, 1]} : vector<1x16x22xf32> to vector<1x16x16xf32>
    %48 = vector.broadcast %46 : f32 to vector<1x16x16xf32>
    %49 = arith.mulf %48, %47 : vector<1x16x16xf32>
    %50 = arith.addf %45, %49 : vector<1x16x16xf32>
    %51 = arith.addf %41, %50 : vector<1x16x16xf32>
    %c0_47 = arith.constant 0 : index
    %c2_48 = arith.constant 2 : index
    %52 = memref.load %arg1[%c0_47, %c2_48] : memref<2x49xf32, #tpu.memory_space<smem>>
    %53 = vector.extract_strided_slice %30 {offsets = [0, 0, 2], sizes = [1, 16, 16], strides = [1, 1, 1]} : vector<1x16x22xf32> to vector<1x16x16xf32>
    %54 = vector.broadcast %52 : f32 to vector<1x16x16xf32>
    %55 = arith.mulf %54, %53 : vector<1x16x16xf32>
    %c1_49 = arith.constant 1 : index
    %c2_50 = arith.constant 2 : index
    %56 = memref.load %arg1[%c1_49, %c2_50] : memref<2x49xf32, #tpu.memory_space<smem>>
    %57 = vector.extract_strided_slice %32 {offsets = [0, 0, 2], sizes = [1, 16, 16], strides = [1, 1, 1]} : vector<1x16x22xf32> to vector<1x16x16xf32>
    %58 = vector.broadcast %56 : f32 to vector<1x16x16xf32>
    %59 = arith.mulf %58, %57 : vector<1x16x16xf32>
    %60 = arith.addf %55, %59 : vector<1x16x16xf32>
    %61 = arith.addf %51, %60 : vector<1x16x16xf32>
    %c0_51 = arith.constant 0 : index
    %c3_52 = arith.constant 3 : index
    %62 = memref.load %arg1[%c0_51, %c3_52] : memref<2x49xf32, #tpu.memory_space<smem>>
    %63 = vector.extract_strided_slice %30 {offsets = [0, 0, 3], sizes = [1, 16, 16], strides = [1, 1, 1]} : vector<1x16x22xf32> to vector<1x16x16xf32>
    %64 = vector.broadcast %62 : f32 to vector<1x16x16xf32>
    %65 = arith.mulf %64, %63 : vector<1x16x16xf32>
    %c1_53 = arith.constant 1 : index
    %c3_54 = arith.constant 3 : index
    %66 = memref.load %arg1[%c1_53, %c3_54] : memref<2x49xf32, #tpu.memory_space<smem>>
    %67 = vector.extract_strided_slice %32 {offsets = [0, 0, 3], sizes = [1, 16, 16], strides = [1, 1, 1]} : vector<1x16x22xf32> to vector<1x16x16xf32>
    %68 = vector.broadcast %66 : f32 to vector<1x16x16xf32>
    %69 = arith.mulf %68, %67 : vector<1x16x16xf32>
    %70 = arith.addf %65, %69 : vector<1x16x16xf32>
    %71 = arith.addf %61, %70 : vector<1x16x16xf32>
    %c0_55 = arith.constant 0 : index
    %c4 = arith.constant 4 : index
    %72 = memref.load %arg1[%c0_55, %c4] : memref<2x49xf32, #tpu.memory_space<smem>>
    %73 = vector.extract_strided_slice %30 {offsets = [0, 0, 4], sizes = [1, 16, 16], strides = [1, 1, 1]} : vector<1x16x22xf32> to vector<1x16x16xf32>
    %74 = vector.broadcast %72 : f32 to vector<1x16x16xf32>
    %75 = arith.mulf %74, %73 : vector<1x16x16xf32>
    %c1_56 = arith.constant 1 : index
    %c4_57 = arith.constant 4 : index
    %76 = memref.load %arg1[%c1_56, %c4_57] : memref<2x49xf32, #tpu.memory_space<smem>>
    %77 = vector.extract_strided_slice %32 {offsets = [0, 0, 4], sizes = [1, 16, 16], strides = [1, 1, 1]} : vector<1x16x22xf32> to vector<1x16x16xf32>
    %78 = vector.broadcast %76 : f32 to vector<1x16x16xf32>
    %79 = arith.mulf %78, %77 : vector<1x16x16xf32>
    %80 = arith.addf %75, %79 : vector<1x16x16xf32>
    %81 = arith.addf %71, %80 : vector<1x16x16xf32>
    %c0_58 = arith.constant 0 : index
    %c5_59 = arith.constant 5 : index
    %82 = memref.load %arg1[%c0_58, %c5_59] : memref<2x49xf32, #tpu.memory_space<smem>>
    %83 = vector.extract_strided_slice %30 {offsets = [0, 0, 5], sizes = [1, 16, 16], strides = [1, 1, 1]} : vector<1x16x22xf32> to vector<1x16x16xf32>
    %84 = vector.broadcast %82 : f32 to vector<1x16x16xf32>
    %85 = arith.mulf %84, %83 : vector<1x16x16xf32>
    %c1_60 = arith.constant 1 : index
    %c5_61 = arith.constant 5 : index
    %86 = memref.load %arg1[%c1_60, %c5_61] : memref<2x49xf32, #tpu.memory_space<smem>>
    %87 = vector.extract_strided_slice %32 {offsets = [0, 0, 5], sizes = [1, 16, 16], strides = [1, 1, 1]} : vector<1x16x22xf32> to vector<1x16x16xf32>
    %88 = vector.broadcast %86 : f32 to vector<1x16x16xf32>
    %89 = arith.mulf %88, %87 : vector<1x16x16xf32>
    %90 = arith.addf %85, %89 : vector<1x16x16xf32>
    %91 = arith.addf %81, %90 : vector<1x16x16xf32>
    %c0_62 = arith.constant 0 : index
    %c6 = arith.constant 6 : index
    %92 = memref.load %arg1[%c0_62, %c6] : memref<2x49xf32, #tpu.memory_space<smem>>
    %93 = vector.extract_strided_slice %30 {offsets = [0, 0, 6], sizes = [1, 16, 16], strides = [1, 1, 1]} : vector<1x16x22xf32> to vector<1x16x16xf32>
    %94 = vector.broadcast %92 : f32 to vector<1x16x16xf32>
    %95 = arith.mulf %94, %93 : vector<1x16x16xf32>
    %c1_63 = arith.constant 1 : index
    %c6_64 = arith.constant 6 : index
    %96 = memref.load %arg1[%c1_63, %c6_64] : memref<2x49xf32, #tpu.memory_space<smem>>
    %97 = vector.extract_strided_slice %32 {offsets = [0, 0, 6], sizes = [1, 16, 16], strides = [1, 1, 1]} : vector<1x16x22xf32> to vector<1x16x16xf32>
    %98 = vector.broadcast %96 : f32 to vector<1x16x16xf32>
    %99 = arith.mulf %98, %97 : vector<1x16x16xf32>
    %100 = arith.addf %95, %99 : vector<1x16x16xf32>
    %101 = arith.addf %91, %100 : vector<1x16x16xf32>
    %c0_65 = arith.constant 0 : index
    %c0_66 = arith.constant 0 : index
    %c6_67 = arith.constant 6 : index
    %c0_68 = arith.constant 0 : index
    %102 = vector.load %arg4[%c0_65, %c0_66, %c6_67, %c0_68] : memref<2x1x27x22xf32, #tpu.memory_space<vmem>>, vector<2x1x16x22xf32>
    %103 = vector.extract_strided_slice %102 {offsets = [0, 0, 0, 0], sizes = [1, 1, 16, 22], strides = [1, 1, 1, 1]} : vector<2x1x16x22xf32> to vector<1x1x16x22xf32>
    %104 = vector.shape_cast %103 : vector<1x1x16x22xf32> to vector<1x16x22xf32>
    %105 = vector.extract_strided_slice %102 {offsets = [1, 0, 0, 0], sizes = [1, 1, 16, 22], strides = [1, 1, 1, 1]} : vector<2x1x16x22xf32> to vector<1x1x16x22xf32>
    %106 = vector.shape_cast %105 : vector<1x1x16x22xf32> to vector<1x16x22xf32>
    %c0_69 = arith.constant 0 : index
    %c7 = arith.constant 7 : index
    %107 = memref.load %arg1[%c0_69, %c7] : memref<2x49xf32, #tpu.memory_space<smem>>
    %108 = vector.extract_strided_slice %104 {offsets = [0, 0, 0], sizes = [1, 16, 16], strides = [1, 1, 1]} : vector<1x16x22xf32> to vector<1x16x16xf32>
    %109 = vector.broadcast %107 : f32 to vector<1x16x16xf32>
    %110 = arith.mulf %109, %108 : vector<1x16x16xf32>
    %c1_70 = arith.constant 1 : index
    %c7_71 = arith.constant 7 : index
    %111 = memref.load %arg1[%c1_70, %c7_71] : memref<2x49xf32, #tpu.memory_space<smem>>
    %112 = vector.extract_strided_slice %106 {offsets = [0, 0, 0], sizes = [1, 16, 16], strides = [1, 1, 1]} : vector<1x16x22xf32> to vector<1x16x16xf32>
    %113 = vector.broadcast %111 : f32 to vector<1x16x16xf32>
    %114 = arith.mulf %113, %112 : vector<1x16x16xf32>
    %115 = arith.addf %110, %114 : vector<1x16x16xf32>
    %116 = arith.addf %101, %115 : vector<1x16x16xf32>
    %c0_72 = arith.constant 0 : index
    %c8_73 = arith.constant 8 : index
    %117 = memref.load %arg1[%c0_72, %c8_73] : memref<2x49xf32, #tpu.memory_space<smem>>
    %118 = vector.extract_strided_slice %104 {offsets = [0, 0, 1], sizes = [1, 16, 16], strides = [1, 1, 1]} : vector<1x16x22xf32> to vector<1x16x16xf32>
    %119 = vector.broadcast %117 : f32 to vector<1x16x16xf32>
    %120 = arith.mulf %119, %118 : vector<1x16x16xf32>
    %c1_74 = arith.constant 1 : index
    %c8_75 = arith.constant 8 : index
    %121 = memref.load %arg1[%c1_74, %c8_75] : memref<2x49xf32, #tpu.memory_space<smem>>
    %122 = vector.extract_strided_slice %106 {offsets = [0, 0, 1], sizes = [1, 16, 16], strides = [1, 1, 1]} : vector<1x16x22xf32> to vector<1x16x16xf32>
    %123 = vector.broadcast %121 : f32 to vector<1x16x16xf32>
    %124 = arith.mulf %123, %122 : vector<1x16x16xf32>
    %125 = arith.addf %120, %124 : vector<1x16x16xf32>
    %126 = arith.addf %116, %125 : vector<1x16x16xf32>
    %c0_76 = arith.constant 0 : index
    %c9 = arith.constant 9 : index
    %127 = memref.load %arg1[%c0_76, %c9] : memref<2x49xf32, #tpu.memory_space<smem>>
    %128 = vector.extract_strided_slice %104 {offsets = [0, 0, 2], sizes = [1, 16, 16], strides = [1, 1, 1]} : vector<1x16x22xf32> to vector<1x16x16xf32>
    %129 = vector.broadcast %127 : f32 to vector<1x16x16xf32>
    %130 = arith.mulf %129, %128 : vector<1x16x16xf32>
    %c1_77 = arith.constant 1 : index
    %c9_78 = arith.constant 9 : index
    %131 = memref.load %arg1[%c1_77, %c9_78] : memref<2x49xf32, #tpu.memory_space<smem>>
    %132 = vector.extract_strided_slice %106 {offsets = [0, 0, 2], sizes = [1, 16, 16], strides = [1, 1, 1]} : vector<1x16x22xf32> to vector<1x16x16xf32>
    %133 = vector.broadcast %131 : f32 to vector<1x16x16xf32>
    %134 = arith.mulf %133, %132 : vector<1x16x16xf32>
    %135 = arith.addf %130, %134 : vector<1x16x16xf32>
    %136 = arith.addf %126, %135 : vector<1x16x16xf32>
    %c0_79 = arith.constant 0 : index
    %c10 = arith.constant 10 : index
    %137 = memref.load %arg1[%c0_79, %c10] : memref<2x49xf32, #tpu.memory_space<smem>>
    %138 = vector.extract_strided_slice %104 {offsets = [0, 0, 3], sizes = [1, 16, 16], strides = [1, 1, 1]} : vector<1x16x22xf32> to vector<1x16x16xf32>
    %139 = vector.broadcast %137 : f32 to vector<1x16x16xf32>
    %140 = arith.mulf %139, %138 : vector<1x16x16xf32>
    %c1_80 = arith.constant 1 : index
    %c10_81 = arith.constant 10 : index
    %141 = memref.load %arg1[%c1_80, %c10_81] : memref<2x49xf32, #tpu.memory_space<smem>>
    %142 = vector.extract_strided_slice %106 {offsets = [0, 0, 3], sizes = [1, 16, 16], strides = [1, 1, 1]} : vector<1x16x22xf32> to vector<1x16x16xf32>
    %143 = vector.broadcast %141 : f32 to vector<1x16x16xf32>
    %144 = arith.mulf %143, %142 : vector<1x16x16xf32>
    %145 = arith.addf %140, %144 : vector<1x16x16xf32>
    %146 = arith.addf %136, %145 : vector<1x16x16xf32>
    %c0_82 = arith.constant 0 : index
    %c11 = arith.constant 11 : index
    %147 = memref.load %arg1[%c0_82, %c11] : memref<2x49xf32, #tpu.memory_space<smem>>
    %148 = vector.extract_strided_slice %104 {offsets = [0, 0, 4], sizes = [1, 16, 16], strides = [1, 1, 1]} : vector<1x16x22xf32> to vector<1x16x16xf32>
    %149 = vector.broadcast %147 : f32 to vector<1x16x16xf32>
    %150 = arith.mulf %149, %148 : vector<1x16x16xf32>
    %c1_83 = arith.constant 1 : index
    %c11_84 = arith.constant 11 : index
    %151 = memref.load %arg1[%c1_83, %c11_84] : memref<2x49xf32, #tpu.memory_space<smem>>
    %152 = vector.extract_strided_slice %106 {offsets = [0, 0, 4], sizes = [1, 16, 16], strides = [1, 1, 1]} : vector<1x16x22xf32> to vector<1x16x16xf32>
    %153 = vector.broadcast %151 : f32 to vector<1x16x16xf32>
    %154 = arith.mulf %153, %152 : vector<1x16x16xf32>
    %155 = arith.addf %150, %154 : vector<1x16x16xf32>
    %156 = arith.addf %146, %155 : vector<1x16x16xf32>
    %c0_85 = arith.constant 0 : index
    %c12 = arith.constant 12 : index
    %157 = memref.load %arg1[%c0_85, %c12] : memref<2x49xf32, #tpu.memory_space<smem>>
    %158 = vector.extract_strided_slice %104 {offsets = [0, 0, 5], sizes = [1, 16, 16], strides = [1, 1, 1]} : vector<1x16x22xf32> to vector<1x16x16xf32>
    %159 = vector.broadcast %157 : f32 to vector<1x16x16xf32>
    %160 = arith.mulf %159, %158 : vector<1x16x16xf32>
    %c1_86 = arith.constant 1 : index
    %c12_87 = arith.constant 12 : index
    %161 = memref.load %arg1[%c1_86, %c12_87] : memref<2x49xf32, #tpu.memory_space<smem>>
    %162 = vector.extract_strided_slice %106 {offsets = [0, 0, 5], sizes = [1, 16, 16], strides = [1, 1, 1]} : vector<1x16x22xf32> to vector<1x16x16xf32>
    %163 = vector.broadcast %161 : f32 to vector<1x16x16xf32>
    %164 = arith.mulf %163, %162 : vector<1x16x16xf32>
    %165 = arith.addf %160, %164 : vector<1x16x16xf32>
    %166 = arith.addf %156, %165 : vector<1x16x16xf32>
    %c0_88 = arith.constant 0 : index
    %c13 = arith.constant 13 : index
    %167 = memref.load %arg1[%c0_88, %c13] : memref<2x49xf32, #tpu.memory_space<smem>>
    %168 = vector.extract_strided_slice %104 {offsets = [0, 0, 6], sizes = [1, 16, 16], strides = [1, 1, 1]} : vector<1x16x22xf32> to vector<1x16x16xf32>
    %169 = vector.broadcast %167 : f32 to vector<1x16x16xf32>
    %170 = arith.mulf %169, %168 : vector<1x16x16xf32>
    %c1_89 = arith.constant 1 : index
    %c13_90 = arith.constant 13 : index
    %171 = memref.load %arg1[%c1_89, %c13_90] : memref<2x49xf32, #tpu.memory_space<smem>>
    %172 = vector.extract_strided_slice %106 {offsets = [0, 0, 6], sizes = [1, 16, 16], strides = [1, 1, 1]} : vector<1x16x22xf32> to vector<1x16x16xf32>
    %173 = vector.broadcast %171 : f32 to vector<1x16x16xf32>
    %174 = arith.mulf %173, %172 : vector<1x16x16xf32>
    %175 = arith.addf %170, %174 : vector<1x16x16xf32>
    %176 = arith.addf %166, %175 : vector<1x16x16xf32>
    %c0_91 = arith.constant 0 : index
    %c0_92 = arith.constant 0 : index
    %c7_93 = arith.constant 7 : index
    %c0_94 = arith.constant 0 : index
    %177 = vector.load %arg4[%c0_91, %c0_92, %c7_93, %c0_94] : memref<2x1x27x22xf32, #tpu.memory_space<vmem>>, vector<2x1x16x22xf32>
    %178 = vector.extract_strided_slice %177 {offsets = [0, 0, 0, 0], sizes = [1, 1, 16, 22], strides = [1, 1, 1, 1]} : vector<2x1x16x22xf32> to vector<1x1x16x22xf32>
    %179 = vector.shape_cast %178 : vector<1x1x16x22xf32> to vector<1x16x22xf32>
    %180 = vector.extract_strided_slice %177 {offsets = [1, 0, 0, 0], sizes = [1, 1, 16, 22], strides = [1, 1, 1, 1]} : vector<2x1x16x22xf32> to vector<1x1x16x22xf32>
    %181 = vector.shape_cast %180 : vector<1x1x16x22xf32> to vector<1x16x22xf32>
    %c0_95 = arith.constant 0 : index
    %c14 = arith.constant 14 : index
    %182 = memref.load %arg1[%c0_95, %c14] : memref<2x49xf32, #tpu.memory_space<smem>>
    %183 = vector.extract_strided_slice %179 {offsets = [0, 0, 0], sizes = [1, 16, 16], strides = [1, 1, 1]} : vector<1x16x22xf32> to vector<1x16x16xf32>
    %184 = vector.broadcast %182 : f32 to vector<1x16x16xf32>
    %185 = arith.mulf %184, %183 : vector<1x16x16xf32>
    %c1_96 = arith.constant 1 : index
    %c14_97 = arith.constant 14 : index
    %186 = memref.load %arg1[%c1_96, %c14_97] : memref<2x49xf32, #tpu.memory_space<smem>>
    %187 = vector.extract_strided_slice %181 {offsets = [0, 0, 0], sizes = [1, 16, 16], strides = [1, 1, 1]} : vector<1x16x22xf32> to vector<1x16x16xf32>
    %188 = vector.broadcast %186 : f32 to vector<1x16x16xf32>
    %189 = arith.mulf %188, %187 : vector<1x16x16xf32>
    %190 = arith.addf %185, %189 : vector<1x16x16xf32>
    %191 = arith.addf %176, %190 : vector<1x16x16xf32>
    %c0_98 = arith.constant 0 : index
    %c15 = arith.constant 15 : index
    %192 = memref.load %arg1[%c0_98, %c15] : memref<2x49xf32, #tpu.memory_space<smem>>
    %193 = vector.extract_strided_slice %179 {offsets = [0, 0, 1], sizes = [1, 16, 16], strides = [1, 1, 1]} : vector<1x16x22xf32> to vector<1x16x16xf32>
    %194 = vector.broadcast %192 : f32 to vector<1x16x16xf32>
    %195 = arith.mulf %194, %193 : vector<1x16x16xf32>
    %c1_99 = arith.constant 1 : index
    %c15_100 = arith.constant 15 : index
    %196 = memref.load %arg1[%c1_99, %c15_100] : memref<2x49xf32, #tpu.memory_space<smem>>
    %197 = vector.extract_strided_slice %181 {offsets = [0, 0, 1], sizes = [1, 16, 16], strides = [1, 1, 1]} : vector<1x16x22xf32> to vector<1x16x16xf32>
    %198 = vector.broadcast %196 : f32 to vector<1x16x16xf32>
    %199 = arith.mulf %198, %197 : vector<1x16x16xf32>
    %200 = arith.addf %195, %199 : vector<1x16x16xf32>
    %201 = arith.addf %191, %200 : vector<1x16x16xf32>
    %c0_101 = arith.constant 0 : index
    %c16 = arith.constant 16 : index
    %202 = memref.load %arg1[%c0_101, %c16] : memref<2x49xf32, #tpu.memory_space<smem>>
    %203 = vector.extract_strided_slice %179 {offsets = [0, 0, 2], sizes = [1, 16, 16], strides = [1, 1, 1]} : vector<1x16x22xf32> to vector<1x16x16xf32>
    %204 = vector.broadcast %202 : f32 to vector<1x16x16xf32>
    %205 = arith.mulf %204, %203 : vector<1x16x16xf32>
    %c1_102 = arith.constant 1 : index
    %c16_103 = arith.constant 16 : index
    %206 = memref.load %arg1[%c1_102, %c16_103] : memref<2x49xf32, #tpu.memory_space<smem>>
    %207 = vector.extract_strided_slice %181 {offsets = [0, 0, 2], sizes = [1, 16, 16], strides = [1, 1, 1]} : vector<1x16x22xf32> to vector<1x16x16xf32>
    %208 = vector.broadcast %206 : f32 to vector<1x16x16xf32>
    %209 = arith.mulf %208, %207 : vector<1x16x16xf32>
    %210 = arith.addf %205, %209 : vector<1x16x16xf32>
    %211 = arith.addf %201, %210 : vector<1x16x16xf32>
    %c0_104 = arith.constant 0 : index
    %c17 = arith.constant 17 : index
    %212 = memref.load %arg1[%c0_104, %c17] : memref<2x49xf32, #tpu.memory_space<smem>>
    %213 = vector.extract_strided_slice %179 {offsets = [0, 0, 3], sizes = [1, 16, 16], strides = [1, 1, 1]} : vector<1x16x22xf32> to vector<1x16x16xf32>
    %214 = vector.broadcast %212 : f32 to vector<1x16x16xf32>
    %215 = arith.mulf %214, %213 : vector<1x16x16xf32>
    %c1_105 = arith.constant 1 : index
    %c17_106 = arith.constant 17 : index
    %216 = memref.load %arg1[%c1_105, %c17_106] : memref<2x49xf32, #tpu.memory_space<smem>>
    %217 = vector.extract_strided_slice %181 {offsets = [0, 0, 3], sizes = [1, 16, 16], strides = [1, 1, 1]} : vector<1x16x22xf32> to vector<1x16x16xf32>
    %218 = vector.broadcast %216 : f32 to vector<1x16x16xf32>
    %219 = arith.mulf %218, %217 : vector<1x16x16xf32>
    %220 = arith.addf %215, %219 : vector<1x16x16xf32>
    %221 = arith.addf %211, %220 : vector<1x16x16xf32>
    %c0_107 = arith.constant 0 : index
    %c18 = arith.constant 18 : index
    %222 = memref.load %arg1[%c0_107, %c18] : memref<2x49xf32, #tpu.memory_space<smem>>
    %223 = vector.extract_strided_slice %179 {offsets = [0, 0, 4], sizes = [1, 16, 16], strides = [1, 1, 1]} : vector<1x16x22xf32> to vector<1x16x16xf32>
    %224 = vector.broadcast %222 : f32 to vector<1x16x16xf32>
    %225 = arith.mulf %224, %223 : vector<1x16x16xf32>
    %c1_108 = arith.constant 1 : index
    %c18_109 = arith.constant 18 : index
    %226 = memref.load %arg1[%c1_108, %c18_109] : memref<2x49xf32, #tpu.memory_space<smem>>
    %227 = vector.extract_strided_slice %181 {offsets = [0, 0, 4], sizes = [1, 16, 16], strides = [1, 1, 1]} : vector<1x16x22xf32> to vector<1x16x16xf32>
    %228 = vector.broadcast %226 : f32 to vector<1x16x16xf32>
    %229 = arith.mulf %228, %227 : vector<1x16x16xf32>
    %230 = arith.addf %225, %229 : vector<1x16x16xf32>
    %231 = arith.addf %221, %230 : vector<1x16x16xf32>
    %c0_110 = arith.constant 0 : index
    %c19_111 = arith.constant 19 : index
    %232 = memref.load %arg1[%c0_110, %c19_111] : memref<2x49xf32, #tpu.memory_space<smem>>
    %233 = vector.extract_strided_slice %179 {offsets = [0, 0, 5], sizes = [1, 16, 16], strides = [1, 1, 1]} : vector<1x16x22xf32> to vector<1x16x16xf32>
    %234 = vector.broadcast %232 : f32 to vector<1x16x16xf32>
    %235 = arith.mulf %234, %233 : vector<1x16x16xf32>
    %c1_112 = arith.constant 1 : index
    %c19_113 = arith.constant 19 : index
    %236 = memref.load %arg1[%c1_112, %c19_113] : memref<2x49xf32, #tpu.memory_space<smem>>
    %237 = vector.extract_strided_slice %181 {offsets = [0, 0, 5], sizes = [1, 16, 16], strides = [1, 1, 1]} : vector<1x16x22xf32> to vector<1x16x16xf32>
    %238 = vector.broadcast %236 : f32 to vector<1x16x16xf32>
    %239 = arith.mulf %238, %237 : vector<1x16x16xf32>
    %240 = arith.addf %235, %239 : vector<1x16x16xf32>
    %241 = arith.addf %231, %240 : vector<1x16x16xf32>
    %c0_114 = arith.constant 0 : index
    %c20 = arith.constant 20 : index
    %242 = memref.load %arg1[%c0_114, %c20] : memref<2x49xf32, #tpu.memory_space<smem>>
    %243 = vector.extract_strided_slice %179 {offsets = [0, 0, 6], sizes = [1, 16, 16], strides = [1, 1, 1]} : vector<1x16x22xf32> to vector<1x16x16xf32>
    %244 = vector.broadcast %242 : f32 to vector<1x16x16xf32>
    %245 = arith.mulf %244, %243 : vector<1x16x16xf32>
    %c1_115 = arith.constant 1 : index
    %c20_116 = arith.constant 20 : index
    %246 = memref.load %arg1[%c1_115, %c20_116] : memref<2x49xf32, #tpu.memory_space<smem>>
    %247 = vector.extract_strided_slice %181 {offsets = [0, 0, 6], sizes = [1, 16, 16], strides = [1, 1, 1]} : vector<1x16x22xf32> to vector<1x16x16xf32>
    %248 = vector.broadcast %246 : f32 to vector<1x16x16xf32>
    %249 = arith.mulf %248, %247 : vector<1x16x16xf32>
    %250 = arith.addf %245, %249 : vector<1x16x16xf32>
    %251 = arith.addf %241, %250 : vector<1x16x16xf32>
    %c0_117 = arith.constant 0 : index
    %c0_118 = arith.constant 0 : index
    %c8_119 = arith.constant 8 : index
    %c0_120 = arith.constant 0 : index
    %252 = vector.load %arg4[%c0_117, %c0_118, %c8_119, %c0_120] : memref<2x1x27x22xf32, #tpu.memory_space<vmem>>, vector<2x1x16x22xf32>
    %253 = vector.extract_strided_slice %252 {offsets = [0, 0, 0, 0], sizes = [1, 1, 16, 22], strides = [1, 1, 1, 1]} : vector<2x1x16x22xf32> to vector<1x1x16x22xf32>
    %254 = vector.shape_cast %253 : vector<1x1x16x22xf32> to vector<1x16x22xf32>
    %255 = vector.extract_strided_slice %252 {offsets = [1, 0, 0, 0], sizes = [1, 1, 16, 22], strides = [1, 1, 1, 1]} : vector<2x1x16x22xf32> to vector<1x1x16x22xf32>
    %256 = vector.shape_cast %255 : vector<1x1x16x22xf32> to vector<1x16x22xf32>
    %c0_121 = arith.constant 0 : index
    %c21 = arith.constant 21 : index
    %257 = memref.load %arg1[%c0_121, %c21] : memref<2x49xf32, #tpu.memory_space<smem>>
    %258 = vector.extract_strided_slice %254 {offsets = [0, 0, 0], sizes = [1, 16, 16], strides = [1, 1, 1]} : vector<1x16x22xf32> to vector<1x16x16xf32>
    %259 = vector.broadcast %257 : f32 to vector<1x16x16xf32>
    %260 = arith.mulf %259, %258 : vector<1x16x16xf32>
    %c1_122 = arith.constant 1 : index
    %c21_123 = arith.constant 21 : index
    %261 = memref.load %arg1[%c1_122, %c21_123] : memref<2x49xf32, #tpu.memory_space<smem>>
    %262 = vector.extract_strided_slice %256 {offsets = [0, 0, 0], sizes = [1, 16, 16], strides = [1, 1, 1]} : vector<1x16x22xf32> to vector<1x16x16xf32>
    %263 = vector.broadcast %261 : f32 to vector<1x16x16xf32>
    %264 = arith.mulf %263, %262 : vector<1x16x16xf32>
    %265 = arith.addf %260, %264 : vector<1x16x16xf32>
    %266 = arith.addf %251, %265 : vector<1x16x16xf32>
    %c0_124 = arith.constant 0 : index
    %c22 = arith.constant 22 : index
    %267 = memref.load %arg1[%c0_124, %c22] : memref<2x49xf32, #tpu.memory_space<smem>>
    %268 = vector.extract_strided_slice %254 {offsets = [0, 0, 1], sizes = [1, 16, 16], strides = [1, 1, 1]} : vector<1x16x22xf32> to vector<1x16x16xf32>
    %269 = vector.broadcast %267 : f32 to vector<1x16x16xf32>
    %270 = arith.mulf %269, %268 : vector<1x16x16xf32>
    %c1_125 = arith.constant 1 : index
    %c22_126 = arith.constant 22 : index
    %271 = memref.load %arg1[%c1_125, %c22_126] : memref<2x49xf32, #tpu.memory_space<smem>>
    %272 = vector.extract_strided_slice %256 {offsets = [0, 0, 1], sizes = [1, 16, 16], strides = [1, 1, 1]} : vector<1x16x22xf32> to vector<1x16x16xf32>
    %273 = vector.broadcast %271 : f32 to vector<1x16x16xf32>
    %274 = arith.mulf %273, %272 : vector<1x16x16xf32>
    %275 = arith.addf %270, %274 : vector<1x16x16xf32>
    %276 = arith.addf %266, %275 : vector<1x16x16xf32>
    %c0_127 = arith.constant 0 : index
    %c23 = arith.constant 23 : index
    %277 = memref.load %arg1[%c0_127, %c23] : memref<2x49xf32, #tpu.memory_space<smem>>
    %278 = vector.extract_strided_slice %254 {offsets = [0, 0, 2], sizes = [1, 16, 16], strides = [1, 1, 1]} : vector<1x16x22xf32> to vector<1x16x16xf32>
    %279 = vector.broadcast %277 : f32 to vector<1x16x16xf32>
    %280 = arith.mulf %279, %278 : vector<1x16x16xf32>
    %c1_128 = arith.constant 1 : index
    %c23_129 = arith.constant 23 : index
    %281 = memref.load %arg1[%c1_128, %c23_129] : memref<2x49xf32, #tpu.memory_space<smem>>
    %282 = vector.extract_strided_slice %256 {offsets = [0, 0, 2], sizes = [1, 16, 16], strides = [1, 1, 1]} : vector<1x16x22xf32> to vector<1x16x16xf32>
    %283 = vector.broadcast %281 : f32 to vector<1x16x16xf32>
    %284 = arith.mulf %283, %282 : vector<1x16x16xf32>
    %285 = arith.addf %280, %284 : vector<1x16x16xf32>
    %286 = arith.addf %276, %285 : vector<1x16x16xf32>
    %c0_130 = arith.constant 0 : index
    %c24_131 = arith.constant 24 : index
    %287 = memref.load %arg1[%c0_130, %c24_131] : memref<2x49xf32, #tpu.memory_space<smem>>
    %288 = vector.extract_strided_slice %254 {offsets = [0, 0, 3], sizes = [1, 16, 16], strides = [1, 1, 1]} : vector<1x16x22xf32> to vector<1x16x16xf32>
    %289 = vector.broadcast %287 : f32 to vector<1x16x16xf32>
    %290 = arith.mulf %289, %288 : vector<1x16x16xf32>
    %c1_132 = arith.constant 1 : index
    %c24_133 = arith.constant 24 : index
    %291 = memref.load %arg1[%c1_132, %c24_133] : memref<2x49xf32, #tpu.memory_space<smem>>
    %292 = vector.extract_strided_slice %256 {offsets = [0, 0, 3], sizes = [1, 16, 16], strides = [1, 1, 1]} : vector<1x16x22xf32> to vector<1x16x16xf32>
    %293 = vector.broadcast %291 : f32 to vector<1x16x16xf32>
    %294 = arith.mulf %293, %292 : vector<1x16x16xf32>
    %295 = arith.addf %290, %294 : vector<1x16x16xf32>
    %296 = arith.addf %286, %295 : vector<1x16x16xf32>
    %c0_134 = arith.constant 0 : index
    %c25 = arith.constant 25 : index
    %297 = memref.load %arg1[%c0_134, %c25] : memref<2x49xf32, #tpu.memory_space<smem>>
    %298 = vector.extract_strided_slice %254 {offsets = [0, 0, 4], sizes = [1, 16, 16], strides = [1, 1, 1]} : vector<1x16x22xf32> to vector<1x16x16xf32>
    %299 = vector.broadcast %297 : f32 to vector<1x16x16xf32>
    %300 = arith.mulf %299, %298 : vector<1x16x16xf32>
    %c1_135 = arith.constant 1 : index
    %c25_136 = arith.constant 25 : index
    %301 = memref.load %arg1[%c1_135, %c25_136] : memref<2x49xf32, #tpu.memory_space<smem>>
    %302 = vector.extract_strided_slice %256 {offsets = [0, 0, 4], sizes = [1, 16, 16], strides = [1, 1, 1]} : vector<1x16x22xf32> to vector<1x16x16xf32>
    %303 = vector.broadcast %301 : f32 to vector<1x16x16xf32>
    %304 = arith.mulf %303, %302 : vector<1x16x16xf32>
    %305 = arith.addf %300, %304 : vector<1x16x16xf32>
    %306 = arith.addf %296, %305 : vector<1x16x16xf32>
    %c0_137 = arith.constant 0 : index
    %c26 = arith.constant 26 : index
    %307 = memref.load %arg1[%c0_137, %c26] : memref<2x49xf32, #tpu.memory_space<smem>>
    %308 = vector.extract_strided_slice %254 {offsets = [0, 0, 5], sizes = [1, 16, 16], strides = [1, 1, 1]} : vector<1x16x22xf32> to vector<1x16x16xf32>
    %309 = vector.broadcast %307 : f32 to vector<1x16x16xf32>
    %310 = arith.mulf %309, %308 : vector<1x16x16xf32>
    %c1_138 = arith.constant 1 : index
    %c26_139 = arith.constant 26 : index
    %311 = memref.load %arg1[%c1_138, %c26_139] : memref<2x49xf32, #tpu.memory_space<smem>>
    %312 = vector.extract_strided_slice %256 {offsets = [0, 0, 5], sizes = [1, 16, 16], strides = [1, 1, 1]} : vector<1x16x22xf32> to vector<1x16x16xf32>
    %313 = vector.broadcast %311 : f32 to vector<1x16x16xf32>
    %314 = arith.mulf %313, %312 : vector<1x16x16xf32>
    %315 = arith.addf %310, %314 : vector<1x16x16xf32>
    %316 = arith.addf %306, %315 : vector<1x16x16xf32>
    %c0_140 = arith.constant 0 : index
    %c27 = arith.constant 27 : index
    %317 = memref.load %arg1[%c0_140, %c27] : memref<2x49xf32, #tpu.memory_space<smem>>
    %318 = vector.extract_strided_slice %254 {offsets = [0, 0, 6], sizes = [1, 16, 16], strides = [1, 1, 1]} : vector<1x16x22xf32> to vector<1x16x16xf32>
    %319 = vector.broadcast %317 : f32 to vector<1x16x16xf32>
    %320 = arith.mulf %319, %318 : vector<1x16x16xf32>
    %c1_141 = arith.constant 1 : index
    %c27_142 = arith.constant 27 : index
    %321 = memref.load %arg1[%c1_141, %c27_142] : memref<2x49xf32, #tpu.memory_space<smem>>
    %322 = vector.extract_strided_slice %256 {offsets = [0, 0, 6], sizes = [1, 16, 16], strides = [1, 1, 1]} : vector<1x16x22xf32> to vector<1x16x16xf32>
    %323 = vector.broadcast %321 : f32 to vector<1x16x16xf32>
    %324 = arith.mulf %323, %322 : vector<1x16x16xf32>
    %325 = arith.addf %320, %324 : vector<1x16x16xf32>
    %326 = arith.addf %316, %325 : vector<1x16x16xf32>
    %c0_143 = arith.constant 0 : index
    %c0_144 = arith.constant 0 : index
    %c9_145 = arith.constant 9 : index
    %c0_146 = arith.constant 0 : index
    %327 = vector.load %arg4[%c0_143, %c0_144, %c9_145, %c0_146] : memref<2x1x27x22xf32, #tpu.memory_space<vmem>>, vector<2x1x16x22xf32>
    %328 = vector.extract_strided_slice %327 {offsets = [0, 0, 0, 0], sizes = [1, 1, 16, 22], strides = [1, 1, 1, 1]} : vector<2x1x16x22xf32> to vector<1x1x16x22xf32>
    %329 = vector.shape_cast %328 : vector<1x1x16x22xf32> to vector<1x16x22xf32>
    %330 = vector.extract_strided_slice %327 {offsets = [1, 0, 0, 0], sizes = [1, 1, 16, 22], strides = [1, 1, 1, 1]} : vector<2x1x16x22xf32> to vector<1x1x16x22xf32>
    %331 = vector.shape_cast %330 : vector<1x1x16x22xf32> to vector<1x16x22xf32>
    %c0_147 = arith.constant 0 : index
    %c28 = arith.constant 28 : index
    %332 = memref.load %arg1[%c0_147, %c28] : memref<2x49xf32, #tpu.memory_space<smem>>
    %333 = vector.extract_strided_slice %329 {offsets = [0, 0, 0], sizes = [1, 16, 16], strides = [1, 1, 1]} : vector<1x16x22xf32> to vector<1x16x16xf32>
    %334 = vector.broadcast %332 : f32 to vector<1x16x16xf32>
    %335 = arith.mulf %334, %333 : vector<1x16x16xf32>
    %c1_148 = arith.constant 1 : index
    %c28_149 = arith.constant 28 : index
    %336 = memref.load %arg1[%c1_148, %c28_149] : memref<2x49xf32, #tpu.memory_space<smem>>
    %337 = vector.extract_strided_slice %331 {offsets = [0, 0, 0], sizes = [1, 16, 16], strides = [1, 1, 1]} : vector<1x16x22xf32> to vector<1x16x16xf32>
    %338 = vector.broadcast %336 : f32 to vector<1x16x16xf32>
    %339 = arith.mulf %338, %337 : vector<1x16x16xf32>
    %340 = arith.addf %335, %339 : vector<1x16x16xf32>
    %341 = arith.addf %326, %340 : vector<1x16x16xf32>
    %c0_150 = arith.constant 0 : index
    %c29 = arith.constant 29 : index
    %342 = memref.load %arg1[%c0_150, %c29] : memref<2x49xf32, #tpu.memory_space<smem>>
    %343 = vector.extract_strided_slice %329 {offsets = [0, 0, 1], sizes = [1, 16, 16], strides = [1, 1, 1]} : vector<1x16x22xf32> to vector<1x16x16xf32>
    %344 = vector.broadcast %342 : f32 to vector<1x16x16xf32>
    %345 = arith.mulf %344, %343 : vector<1x16x16xf32>
    %c1_151 = arith.constant 1 : index
    %c29_152 = arith.constant 29 : index
    %346 = memref.load %arg1[%c1_151, %c29_152] : memref<2x49xf32, #tpu.memory_space<smem>>
    %347 = vector.extract_strided_slice %331 {offsets = [0, 0, 1], sizes = [1, 16, 16], strides = [1, 1, 1]} : vector<1x16x22xf32> to vector<1x16x16xf32>
    %348 = vector.broadcast %346 : f32 to vector<1x16x16xf32>
    %349 = arith.mulf %348, %347 : vector<1x16x16xf32>
    %350 = arith.addf %345, %349 : vector<1x16x16xf32>
    %351 = arith.addf %341, %350 : vector<1x16x16xf32>
    %c0_153 = arith.constant 0 : index
    %c30 = arith.constant 30 : index
    %352 = memref.load %arg1[%c0_153, %c30] : memref<2x49xf32, #tpu.memory_space<smem>>
    %353 = vector.extract_strided_slice %329 {offsets = [0, 0, 2], sizes = [1, 16, 16], strides = [1, 1, 1]} : vector<1x16x22xf32> to vector<1x16x16xf32>
    %354 = vector.broadcast %352 : f32 to vector<1x16x16xf32>
    %355 = arith.mulf %354, %353 : vector<1x16x16xf32>
    %c1_154 = arith.constant 1 : index
    %c30_155 = arith.constant 30 : index
    %356 = memref.load %arg1[%c1_154, %c30_155] : memref<2x49xf32, #tpu.memory_space<smem>>
    %357 = vector.extract_strided_slice %331 {offsets = [0, 0, 2], sizes = [1, 16, 16], strides = [1, 1, 1]} : vector<1x16x22xf32> to vector<1x16x16xf32>
    %358 = vector.broadcast %356 : f32 to vector<1x16x16xf32>
    %359 = arith.mulf %358, %357 : vector<1x16x16xf32>
    %360 = arith.addf %355, %359 : vector<1x16x16xf32>
    %361 = arith.addf %351, %360 : vector<1x16x16xf32>
    %c0_156 = arith.constant 0 : index
    %c31 = arith.constant 31 : index
    %362 = memref.load %arg1[%c0_156, %c31] : memref<2x49xf32, #tpu.memory_space<smem>>
    %363 = vector.extract_strided_slice %329 {offsets = [0, 0, 3], sizes = [1, 16, 16], strides = [1, 1, 1]} : vector<1x16x22xf32> to vector<1x16x16xf32>
    %364 = vector.broadcast %362 : f32 to vector<1x16x16xf32>
    %365 = arith.mulf %364, %363 : vector<1x16x16xf32>
    %c1_157 = arith.constant 1 : index
    %c31_158 = arith.constant 31 : index
    %366 = memref.load %arg1[%c1_157, %c31_158] : memref<2x49xf32, #tpu.memory_space<smem>>
    %367 = vector.extract_strided_slice %331 {offsets = [0, 0, 3], sizes = [1, 16, 16], strides = [1, 1, 1]} : vector<1x16x22xf32> to vector<1x16x16xf32>
    %368 = vector.broadcast %366 : f32 to vector<1x16x16xf32>
    %369 = arith.mulf %368, %367 : vector<1x16x16xf32>
    %370 = arith.addf %365, %369 : vector<1x16x16xf32>
    %371 = arith.addf %361, %370 : vector<1x16x16xf32>
    %c0_159 = arith.constant 0 : index
    %c32 = arith.constant 32 : index
    %372 = memref.load %arg1[%c0_159, %c32] : memref<2x49xf32, #tpu.memory_space<smem>>
    %373 = vector.extract_strided_slice %329 {offsets = [0, 0, 4], sizes = [1, 16, 16], strides = [1, 1, 1]} : vector<1x16x22xf32> to vector<1x16x16xf32>
    %374 = vector.broadcast %372 : f32 to vector<1x16x16xf32>
    %375 = arith.mulf %374, %373 : vector<1x16x16xf32>
    %c1_160 = arith.constant 1 : index
    %c32_161 = arith.constant 32 : index
    %376 = memref.load %arg1[%c1_160, %c32_161] : memref<2x49xf32, #tpu.memory_space<smem>>
    %377 = vector.extract_strided_slice %331 {offsets = [0, 0, 4], sizes = [1, 16, 16], strides = [1, 1, 1]} : vector<1x16x22xf32> to vector<1x16x16xf32>
    %378 = vector.broadcast %376 : f32 to vector<1x16x16xf32>
    %379 = arith.mulf %378, %377 : vector<1x16x16xf32>
    %380 = arith.addf %375, %379 : vector<1x16x16xf32>
    %381 = arith.addf %371, %380 : vector<1x16x16xf32>
    %c0_162 = arith.constant 0 : index
    %c33 = arith.constant 33 : index
    %382 = memref.load %arg1[%c0_162, %c33] : memref<2x49xf32, #tpu.memory_space<smem>>
    %383 = vector.extract_strided_slice %329 {offsets = [0, 0, 5], sizes = [1, 16, 16], strides = [1, 1, 1]} : vector<1x16x22xf32> to vector<1x16x16xf32>
    %384 = vector.broadcast %382 : f32 to vector<1x16x16xf32>
    %385 = arith.mulf %384, %383 : vector<1x16x16xf32>
    %c1_163 = arith.constant 1 : index
    %c33_164 = arith.constant 33 : index
    %386 = memref.load %arg1[%c1_163, %c33_164] : memref<2x49xf32, #tpu.memory_space<smem>>
    %387 = vector.extract_strided_slice %331 {offsets = [0, 0, 5], sizes = [1, 16, 16], strides = [1, 1, 1]} : vector<1x16x22xf32> to vector<1x16x16xf32>
    %388 = vector.broadcast %386 : f32 to vector<1x16x16xf32>
    %389 = arith.mulf %388, %387 : vector<1x16x16xf32>
    %390 = arith.addf %385, %389 : vector<1x16x16xf32>
    %391 = arith.addf %381, %390 : vector<1x16x16xf32>
    %c0_165 = arith.constant 0 : index
    %c34 = arith.constant 34 : index
    %392 = memref.load %arg1[%c0_165, %c34] : memref<2x49xf32, #tpu.memory_space<smem>>
    %393 = vector.extract_strided_slice %329 {offsets = [0, 0, 6], sizes = [1, 16, 16], strides = [1, 1, 1]} : vector<1x16x22xf32> to vector<1x16x16xf32>
    %394 = vector.broadcast %392 : f32 to vector<1x16x16xf32>
    %395 = arith.mulf %394, %393 : vector<1x16x16xf32>
    %c1_166 = arith.constant 1 : index
    %c34_167 = arith.constant 34 : index
    %396 = memref.load %arg1[%c1_166, %c34_167] : memref<2x49xf32, #tpu.memory_space<smem>>
    %397 = vector.extract_strided_slice %331 {offsets = [0, 0, 6], sizes = [1, 16, 16], strides = [1, 1, 1]} : vector<1x16x22xf32> to vector<1x16x16xf32>
    %398 = vector.broadcast %396 : f32 to vector<1x16x16xf32>
    %399 = arith.mulf %398, %397 : vector<1x16x16xf32>
    %400 = arith.addf %395, %399 : vector<1x16x16xf32>
    %401 = arith.addf %391, %400 : vector<1x16x16xf32>
    %c0_168 = arith.constant 0 : index
    %c0_169 = arith.constant 0 : index
    %c10_170 = arith.constant 10 : index
    %c0_171 = arith.constant 0 : index
    %402 = vector.load %arg4[%c0_168, %c0_169, %c10_170, %c0_171] : memref<2x1x27x22xf32, #tpu.memory_space<vmem>>, vector<2x1x16x22xf32>
    %403 = vector.extract_strided_slice %402 {offsets = [0, 0, 0, 0], sizes = [1, 1, 16, 22], strides = [1, 1, 1, 1]} : vector<2x1x16x22xf32> to vector<1x1x16x22xf32>
    %404 = vector.shape_cast %403 : vector<1x1x16x22xf32> to vector<1x16x22xf32>
    %405 = vector.extract_strided_slice %402 {offsets = [1, 0, 0, 0], sizes = [1, 1, 16, 22], strides = [1, 1, 1, 1]} : vector<2x1x16x22xf32> to vector<1x1x16x22xf32>
    %406 = vector.shape_cast %405 : vector<1x1x16x22xf32> to vector<1x16x22xf32>
    %c0_172 = arith.constant 0 : index
    %c35 = arith.constant 35 : index
    %407 = memref.load %arg1[%c0_172, %c35] : memref<2x49xf32, #tpu.memory_space<smem>>
    %408 = vector.extract_strided_slice %404 {offsets = [0, 0, 0], sizes = [1, 16, 16], strides = [1, 1, 1]} : vector<1x16x22xf32> to vector<1x16x16xf32>
    %409 = vector.broadcast %407 : f32 to vector<1x16x16xf32>
    %410 = arith.mulf %409, %408 : vector<1x16x16xf32>
    %c1_173 = arith.constant 1 : index
    %c35_174 = arith.constant 35 : index
    %411 = memref.load %arg1[%c1_173, %c35_174] : memref<2x49xf32, #tpu.memory_space<smem>>
    %412 = vector.extract_strided_slice %406 {offsets = [0, 0, 0], sizes = [1, 16, 16], strides = [1, 1, 1]} : vector<1x16x22xf32> to vector<1x16x16xf32>
    %413 = vector.broadcast %411 : f32 to vector<1x16x16xf32>
    %414 = arith.mulf %413, %412 : vector<1x16x16xf32>
    %415 = arith.addf %410, %414 : vector<1x16x16xf32>
    %416 = arith.addf %401, %415 : vector<1x16x16xf32>
    %c0_175 = arith.constant 0 : index
    %c36 = arith.constant 36 : index
    %417 = memref.load %arg1[%c0_175, %c36] : memref<2x49xf32, #tpu.memory_space<smem>>
    %418 = vector.extract_strided_slice %404 {offsets = [0, 0, 1], sizes = [1, 16, 16], strides = [1, 1, 1]} : vector<1x16x22xf32> to vector<1x16x16xf32>
    %419 = vector.broadcast %417 : f32 to vector<1x16x16xf32>
    %420 = arith.mulf %419, %418 : vector<1x16x16xf32>
    %c1_176 = arith.constant 1 : index
    %c36_177 = arith.constant 36 : index
    %421 = memref.load %arg1[%c1_176, %c36_177] : memref<2x49xf32, #tpu.memory_space<smem>>
    %422 = vector.extract_strided_slice %406 {offsets = [0, 0, 1], sizes = [1, 16, 16], strides = [1, 1, 1]} : vector<1x16x22xf32> to vector<1x16x16xf32>
    %423 = vector.broadcast %421 : f32 to vector<1x16x16xf32>
    %424 = arith.mulf %423, %422 : vector<1x16x16xf32>
    %425 = arith.addf %420, %424 : vector<1x16x16xf32>
    %426 = arith.addf %416, %425 : vector<1x16x16xf32>
    %c0_178 = arith.constant 0 : index
    %c37 = arith.constant 37 : index
    %427 = memref.load %arg1[%c0_178, %c37] : memref<2x49xf32, #tpu.memory_space<smem>>
    %428 = vector.extract_strided_slice %404 {offsets = [0, 0, 2], sizes = [1, 16, 16], strides = [1, 1, 1]} : vector<1x16x22xf32> to vector<1x16x16xf32>
    %429 = vector.broadcast %427 : f32 to vector<1x16x16xf32>
    %430 = arith.mulf %429, %428 : vector<1x16x16xf32>
    %c1_179 = arith.constant 1 : index
    %c37_180 = arith.constant 37 : index
    %431 = memref.load %arg1[%c1_179, %c37_180] : memref<2x49xf32, #tpu.memory_space<smem>>
    %432 = vector.extract_strided_slice %406 {offsets = [0, 0, 2], sizes = [1, 16, 16], strides = [1, 1, 1]} : vector<1x16x22xf32> to vector<1x16x16xf32>
    %433 = vector.broadcast %431 : f32 to vector<1x16x16xf32>
    %434 = arith.mulf %433, %432 : vector<1x16x16xf32>
    %435 = arith.addf %430, %434 : vector<1x16x16xf32>
    %436 = arith.addf %426, %435 : vector<1x16x16xf32>
    %c0_181 = arith.constant 0 : index
    %c38 = arith.constant 38 : index
    %437 = memref.load %arg1[%c0_181, %c38] : memref<2x49xf32, #tpu.memory_space<smem>>
    %438 = vector.extract_strided_slice %404 {offsets = [0, 0, 3], sizes = [1, 16, 16], strides = [1, 1, 1]} : vector<1x16x22xf32> to vector<1x16x16xf32>
    %439 = vector.broadcast %437 : f32 to vector<1x16x16xf32>
    %440 = arith.mulf %439, %438 : vector<1x16x16xf32>
    %c1_182 = arith.constant 1 : index
    %c38_183 = arith.constant 38 : index
    %441 = memref.load %arg1[%c1_182, %c38_183] : memref<2x49xf32, #tpu.memory_space<smem>>
    %442 = vector.extract_strided_slice %406 {offsets = [0, 0, 3], sizes = [1, 16, 16], strides = [1, 1, 1]} : vector<1x16x22xf32> to vector<1x16x16xf32>
    %443 = vector.broadcast %441 : f32 to vector<1x16x16xf32>
    %444 = arith.mulf %443, %442 : vector<1x16x16xf32>
    %445 = arith.addf %440, %444 : vector<1x16x16xf32>
    %446 = arith.addf %436, %445 : vector<1x16x16xf32>
    %c0_184 = arith.constant 0 : index
    %c39 = arith.constant 39 : index
    %447 = memref.load %arg1[%c0_184, %c39] : memref<2x49xf32, #tpu.memory_space<smem>>
    %448 = vector.extract_strided_slice %404 {offsets = [0, 0, 4], sizes = [1, 16, 16], strides = [1, 1, 1]} : vector<1x16x22xf32> to vector<1x16x16xf32>
    %449 = vector.broadcast %447 : f32 to vector<1x16x16xf32>
    %450 = arith.mulf %449, %448 : vector<1x16x16xf32>
    %c1_185 = arith.constant 1 : index
    %c39_186 = arith.constant 39 : index
    %451 = memref.load %arg1[%c1_185, %c39_186] : memref<2x49xf32, #tpu.memory_space<smem>>
    %452 = vector.extract_strided_slice %406 {offsets = [0, 0, 4], sizes = [1, 16, 16], strides = [1, 1, 1]} : vector<1x16x22xf32> to vector<1x16x16xf32>
    %453 = vector.broadcast %451 : f32 to vector<1x16x16xf32>
    %454 = arith.mulf %453, %452 : vector<1x16x16xf32>
    %455 = arith.addf %450, %454 : vector<1x16x16xf32>
    %456 = arith.addf %446, %455 : vector<1x16x16xf32>
    %c0_187 = arith.constant 0 : index
    %c40 = arith.constant 40 : index
    %457 = memref.load %arg1[%c0_187, %c40] : memref<2x49xf32, #tpu.memory_space<smem>>
    %458 = vector.extract_strided_slice %404 {offsets = [0, 0, 5], sizes = [1, 16, 16], strides = [1, 1, 1]} : vector<1x16x22xf32> to vector<1x16x16xf32>
    %459 = vector.broadcast %457 : f32 to vector<1x16x16xf32>
    %460 = arith.mulf %459, %458 : vector<1x16x16xf32>
    %c1_188 = arith.constant 1 : index
    %c40_189 = arith.constant 40 : index
    %461 = memref.load %arg1[%c1_188, %c40_189] : memref<2x49xf32, #tpu.memory_space<smem>>
    %462 = vector.extract_strided_slice %406 {offsets = [0, 0, 5], sizes = [1, 16, 16], strides = [1, 1, 1]} : vector<1x16x22xf32> to vector<1x16x16xf32>
    %463 = vector.broadcast %461 : f32 to vector<1x16x16xf32>
    %464 = arith.mulf %463, %462 : vector<1x16x16xf32>
    %465 = arith.addf %460, %464 : vector<1x16x16xf32>
    %466 = arith.addf %456, %465 : vector<1x16x16xf32>
    %c0_190 = arith.constant 0 : index
    %c41 = arith.constant 41 : index
    %467 = memref.load %arg1[%c0_190, %c41] : memref<2x49xf32, #tpu.memory_space<smem>>
    %468 = vector.extract_strided_slice %404 {offsets = [0, 0, 6], sizes = [1, 16, 16], strides = [1, 1, 1]} : vector<1x16x22xf32> to vector<1x16x16xf32>
    %469 = vector.broadcast %467 : f32 to vector<1x16x16xf32>
    %470 = arith.mulf %469, %468 : vector<1x16x16xf32>
    %c1_191 = arith.constant 1 : index
    %c41_192 = arith.constant 41 : index
    %471 = memref.load %arg1[%c1_191, %c41_192] : memref<2x49xf32, #tpu.memory_space<smem>>
    %472 = vector.extract_strided_slice %406 {offsets = [0, 0, 6], sizes = [1, 16, 16], strides = [1, 1, 1]} : vector<1x16x22xf32> to vector<1x16x16xf32>
    %473 = vector.broadcast %471 : f32 to vector<1x16x16xf32>
    %474 = arith.mulf %473, %472 : vector<1x16x16xf32>
    %475 = arith.addf %470, %474 : vector<1x16x16xf32>
    %476 = arith.addf %466, %475 : vector<1x16x16xf32>
    %c0_193 = arith.constant 0 : index
    %c0_194 = arith.constant 0 : index
    %c11_195 = arith.constant 11 : index
    %c0_196 = arith.constant 0 : index
    %477 = vector.load %arg4[%c0_193, %c0_194, %c11_195, %c0_196] : memref<2x1x27x22xf32, #tpu.memory_space<vmem>>, vector<2x1x16x22xf32>
    %478 = vector.extract_strided_slice %477 {offsets = [0, 0, 0, 0], sizes = [1, 1, 16, 22], strides = [1, 1, 1, 1]} : vector<2x1x16x22xf32> to vector<1x1x16x22xf32>
    %479 = vector.shape_cast %478 : vector<1x1x16x22xf32> to vector<1x16x22xf32>
    %480 = vector.extract_strided_slice %477 {offsets = [1, 0, 0, 0], sizes = [1, 1, 16, 22], strides = [1, 1, 1, 1]} : vector<2x1x16x22xf32> to vector<1x1x16x22xf32>
    %481 = vector.shape_cast %480 : vector<1x1x16x22xf32> to vector<1x16x22xf32>
    %c0_197 = arith.constant 0 : index
    %c42 = arith.constant 42 : index
    %482 = memref.load %arg1[%c0_197, %c42] : memref<2x49xf32, #tpu.memory_space<smem>>
    %483 = vector.extract_strided_slice %479 {offsets = [0, 0, 0], sizes = [1, 16, 16], strides = [1, 1, 1]} : vector<1x16x22xf32> to vector<1x16x16xf32>
    %484 = vector.broadcast %482 : f32 to vector<1x16x16xf32>
    %485 = arith.mulf %484, %483 : vector<1x16x16xf32>
    %c1_198 = arith.constant 1 : index
    %c42_199 = arith.constant 42 : index
    %486 = memref.load %arg1[%c1_198, %c42_199] : memref<2x49xf32, #tpu.memory_space<smem>>
    %487 = vector.extract_strided_slice %481 {offsets = [0, 0, 0], sizes = [1, 16, 16], strides = [1, 1, 1]} : vector<1x16x22xf32> to vector<1x16x16xf32>
    %488 = vector.broadcast %486 : f32 to vector<1x16x16xf32>
    %489 = arith.mulf %488, %487 : vector<1x16x16xf32>
    %490 = arith.addf %485, %489 : vector<1x16x16xf32>
    %491 = arith.addf %476, %490 : vector<1x16x16xf32>
    %c0_200 = arith.constant 0 : index
    %c43 = arith.constant 43 : index
    %492 = memref.load %arg1[%c0_200, %c43] : memref<2x49xf32, #tpu.memory_space<smem>>
    %493 = vector.extract_strided_slice %479 {offsets = [0, 0, 1], sizes = [1, 16, 16], strides = [1, 1, 1]} : vector<1x16x22xf32> to vector<1x16x16xf32>
    %494 = vector.broadcast %492 : f32 to vector<1x16x16xf32>
    %495 = arith.mulf %494, %493 : vector<1x16x16xf32>
    %c1_201 = arith.constant 1 : index
    %c43_202 = arith.constant 43 : index
    %496 = memref.load %arg1[%c1_201, %c43_202] : memref<2x49xf32, #tpu.memory_space<smem>>
    %497 = vector.extract_strided_slice %481 {offsets = [0, 0, 1], sizes = [1, 16, 16], strides = [1, 1, 1]} : vector<1x16x22xf32> to vector<1x16x16xf32>
    %498 = vector.broadcast %496 : f32 to vector<1x16x16xf32>
    %499 = arith.mulf %498, %497 : vector<1x16x16xf32>
    %500 = arith.addf %495, %499 : vector<1x16x16xf32>
    %501 = arith.addf %491, %500 : vector<1x16x16xf32>
    %c0_203 = arith.constant 0 : index
    %c44 = arith.constant 44 : index
    %502 = memref.load %arg1[%c0_203, %c44] : memref<2x49xf32, #tpu.memory_space<smem>>
    %503 = vector.extract_strided_slice %479 {offsets = [0, 0, 2], sizes = [1, 16, 16], strides = [1, 1, 1]} : vector<1x16x22xf32> to vector<1x16x16xf32>
    %504 = vector.broadcast %502 : f32 to vector<1x16x16xf32>
    %505 = arith.mulf %504, %503 : vector<1x16x16xf32>
    %c1_204 = arith.constant 1 : index
    %c44_205 = arith.constant 44 : index
    %506 = memref.load %arg1[%c1_204, %c44_205] : memref<2x49xf32, #tpu.memory_space<smem>>
    %507 = vector.extract_strided_slice %481 {offsets = [0, 0, 2], sizes = [1, 16, 16], strides = [1, 1, 1]} : vector<1x16x22xf32> to vector<1x16x16xf32>
    %508 = vector.broadcast %506 : f32 to vector<1x16x16xf32>
    %509 = arith.mulf %508, %507 : vector<1x16x16xf32>
    %510 = arith.addf %505, %509 : vector<1x16x16xf32>
    %511 = arith.addf %501, %510 : vector<1x16x16xf32>
    %c0_206 = arith.constant 0 : index
    %c45 = arith.constant 45 : index
    %512 = memref.load %arg1[%c0_206, %c45] : memref<2x49xf32, #tpu.memory_space<smem>>
    %513 = vector.extract_strided_slice %479 {offsets = [0, 0, 3], sizes = [1, 16, 16], strides = [1, 1, 1]} : vector<1x16x22xf32> to vector<1x16x16xf32>
    %514 = vector.broadcast %512 : f32 to vector<1x16x16xf32>
    %515 = arith.mulf %514, %513 : vector<1x16x16xf32>
    %c1_207 = arith.constant 1 : index
    %c45_208 = arith.constant 45 : index
    %516 = memref.load %arg1[%c1_207, %c45_208] : memref<2x49xf32, #tpu.memory_space<smem>>
    %517 = vector.extract_strided_slice %481 {offsets = [0, 0, 3], sizes = [1, 16, 16], strides = [1, 1, 1]} : vector<1x16x22xf32> to vector<1x16x16xf32>
    %518 = vector.broadcast %516 : f32 to vector<1x16x16xf32>
    %519 = arith.mulf %518, %517 : vector<1x16x16xf32>
    %520 = arith.addf %515, %519 : vector<1x16x16xf32>
    %521 = arith.addf %511, %520 : vector<1x16x16xf32>
    %c0_209 = arith.constant 0 : index
    %c46 = arith.constant 46 : index
    %522 = memref.load %arg1[%c0_209, %c46] : memref<2x49xf32, #tpu.memory_space<smem>>
    %523 = vector.extract_strided_slice %479 {offsets = [0, 0, 4], sizes = [1, 16, 16], strides = [1, 1, 1]} : vector<1x16x22xf32> to vector<1x16x16xf32>
    %524 = vector.broadcast %522 : f32 to vector<1x16x16xf32>
    %525 = arith.mulf %524, %523 : vector<1x16x16xf32>
    %c1_210 = arith.constant 1 : index
    %c46_211 = arith.constant 46 : index
    %526 = memref.load %arg1[%c1_210, %c46_211] : memref<2x49xf32, #tpu.memory_space<smem>>
    %527 = vector.extract_strided_slice %481 {offsets = [0, 0, 4], sizes = [1, 16, 16], strides = [1, 1, 1]} : vector<1x16x22xf32> to vector<1x16x16xf32>
    %528 = vector.broadcast %526 : f32 to vector<1x16x16xf32>
    %529 = arith.mulf %528, %527 : vector<1x16x16xf32>
    %530 = arith.addf %525, %529 : vector<1x16x16xf32>
    %531 = arith.addf %521, %530 : vector<1x16x16xf32>
    %c0_212 = arith.constant 0 : index
    %c47 = arith.constant 47 : index
    %532 = memref.load %arg1[%c0_212, %c47] : memref<2x49xf32, #tpu.memory_space<smem>>
    %533 = vector.extract_strided_slice %479 {offsets = [0, 0, 5], sizes = [1, 16, 16], strides = [1, 1, 1]} : vector<1x16x22xf32> to vector<1x16x16xf32>
    %534 = vector.broadcast %532 : f32 to vector<1x16x16xf32>
    %535 = arith.mulf %534, %533 : vector<1x16x16xf32>
    %c1_213 = arith.constant 1 : index
    %c47_214 = arith.constant 47 : index
    %536 = memref.load %arg1[%c1_213, %c47_214] : memref<2x49xf32, #tpu.memory_space<smem>>
    %537 = vector.extract_strided_slice %481 {offsets = [0, 0, 5], sizes = [1, 16, 16], strides = [1, 1, 1]} : vector<1x16x22xf32> to vector<1x16x16xf32>
    %538 = vector.broadcast %536 : f32 to vector<1x16x16xf32>
    %539 = arith.mulf %538, %537 : vector<1x16x16xf32>
    %540 = arith.addf %535, %539 : vector<1x16x16xf32>
    %541 = arith.addf %531, %540 : vector<1x16x16xf32>
    %c0_215 = arith.constant 0 : index
    %c48 = arith.constant 48 : index
    %542 = memref.load %arg1[%c0_215, %c48] : memref<2x49xf32, #tpu.memory_space<smem>>
    %543 = vector.extract_strided_slice %479 {offsets = [0, 0, 6], sizes = [1, 16, 16], strides = [1, 1, 1]} : vector<1x16x22xf32> to vector<1x16x16xf32>
    %544 = vector.broadcast %542 : f32 to vector<1x16x16xf32>
    %545 = arith.mulf %544, %543 : vector<1x16x16xf32>
    %c1_216 = arith.constant 1 : index
    %c48_217 = arith.constant 48 : index
    %546 = memref.load %arg1[%c1_216, %c48_217] : memref<2x49xf32, #tpu.memory_space<smem>>
    %547 = vector.extract_strided_slice %481 {offsets = [0, 0, 6], sizes = [1, 16, 16], strides = [1, 1, 1]} : vector<1x16x22xf32> to vector<1x16x16xf32>
    %548 = vector.broadcast %546 : f32 to vector<1x16x16xf32>
    %549 = arith.mulf %548, %547 : vector<1x16x16xf32>
    %550 = arith.addf %545, %549 : vector<1x16x16xf32>
    %551 = arith.addf %541, %550 : vector<1x16x16xf32>
    %552 = arith.negf %551 : vector<1x16x16xf32>
    %553 = math.exp %552 : vector<1x16x16xf32>
    %cst_218 = arith.constant 1.000000e+00 : f32
    %554 = vector.broadcast %cst_218 : f32 to vector<1x16x16xf32>
    %555 = arith.addf %554, %553 : vector<1x16x16xf32>
    %556 = arith.divf %554, %555 : vector<1x16x16xf32>
    %c0_219 = arith.constant 0 : index
    %c0_220 = arith.constant 0 : index
    %c0_221 = arith.constant 0 : index
    %557 = vector.load %arg3[%c0_219, %c0_220, %c0_221] : memref<1x16x16xf32, #tpu.memory_space<vmem>>, vector<1x16x16xf32>
    tpu.vector_store %arg3[%c0_219, %c0_220, %c0_221], %556 {strides = array<i32>} : memref<1x16x16xf32, #tpu.memory_space<vmem>>, vector<1x16x16xf32>,
    return
  }
  func.func @transform_0(%arg0: i32, %arg1: memref<2x49xf32, #tpu.memory_space<smem>>) -> (i32, i32, i32, i32) {
    %c0_i32 = arith.constant 0 : i32
    %c0_i32_0 = arith.constant 0 : i32
    %c0_i32_1 = arith.constant 0 : i32
    %c0_i32_2 = arith.constant 0 : i32
    return %arg0, %c0_i32, %c0_i32_0, %c0_i32_1 : i32, i32, i32, i32
  }
  func.func @transform_1(%arg0: i32, %arg1: memref<2x49xf32, #tpu.memory_space<smem>>) -> (i32, i32, i32) {
    %c0_i32 = arith.constant 0 : i32
    %c0_i32_0 = arith.constant 0 : i32
    %c0_i32_1 = arith.constant 0 : i32
    return %arg0, %c0_i32, %c0_i32_0 : i32, i32, i32
  }
}

</mosaic_0001>

<llo_original>
// kernel: tpu_custom_call.1
$region0: #{tpu_custom_call.1}
  #allocation0 [shape = 'u32[]', space=smem, size = 0x4, offset = 0x4, fixed_abs, tag = 'smem constant byte address 0x4 - core index']
  #allocation1 [shape = 'u32[144,128]{1,0:T(1,128)}', space=vmem, size = 0x12000, scoped, tag = 'internal scratch']
  #allocation2 [shape = 'f32[2,1,27,22]{3,2,1,0:T(8,128)}', space=vmem, size = 0x8000, scoped, tag = 'scratch operand']
  #allocation3 [shape = 's32[1]{0}', space=sflag, size = 0x4, scoped, tag = 'scoped memory for tpu_custom_call.1']
  #allocation4 [shape = 'u8[1024]{0}', space=smem, size = 0x400, scoped, tag = 'prefetched SMEM operand 0']
  %s0 = inlined_call_operand.hbm [shape: f32[2,49], index: 0, kind: input, shape index: {}]
  %s1 = inlined_call_operand.hbm [shape: f32[2,4,16,16], index: 1, kind: input, shape index: {}]
  %s2 = inlined_call_operand.hbm [shape: f32[2,16,16], index: 2, kind: output, shape index: {}]
  %s3 = sld [smem:[#allocation0]]
  $region41: #{tpu_custom_call.1} parent=0
    _
  %s5 = ssub.s32 1, %s3
  %s6 = scalar_select 0, %s5, %s3
  %8 = dma.hbm_to_smem %s0, 32, [#allocation4], [#allocation3]
  %9 = dma.done [#allocation3], 32
  %10 = sfence
  $region1: #{tpu_custom_call.1} parent=0
    #allocation5 [shape = 'u8[65536]{0}', space=vmem, size = 0x10000, scoped, tag = 'input window, operand 1']
    #allocation6 [shape = 's32[2]{0}', space=sflag, size = 0x8, scoped, tag = 'scoped memory for tpu_custom_call.1']
    #allocation7 [shape = 's32[2]{0}', space=sflag, size = 0x8, scoped, tag = 'scoped memory for tpu_custom_call.1']
    #allocation8 [shape = 'u8[16384]{0}', space=vmem, size = 0x4000, scoped, tag = 'output window, operand 0']
    %11 = vsyncpa [#allocation6], 0
    %s12 = scalar_lea.sflag [#allocation6], 1
    %13 = vsyncpa %s12, 0
    %14 = vsyncpa [#allocation7], 0
    %s15 = scalar_lea.sflag [#allocation7], 1
    %16 = vsyncpa %s15, 0
    loop: start=0, step=1, limit=4
    $region2: #{tpu_custom_call.1} parent=1 // loop_pre_header
      _
    $region3: #{tpu_custom_call.1} parent=1 // loop_header
      %s18 = sphi 0, %s22
      %p19 = scmp.ge.s32.totalorder %s18, 4
      %s28 = sphi 0, %s30
      %s31 = sphi 0, %s28
      %s32 = sphi 0, %s31
      %s48 = sphi 0, %s32
      %s54 = sphi 0, %s56
      %s57 = sphi 0, %s54
      %s58 = sphi 0, %s57
      %s74 = sphi 0, %s58
    $region4: #{tpu_custom_call.1} parent=1 // loop_header_branch
      %21 = sbr.rel (%p19) target = $region8
    $region5: #{tpu_custom_call.1} parent=1 // loop_body
      %s23 = ssub.s32 %s18, 1
      %s24 = ssub.s32 %s18, 2
      %s25 = sadd.s32 %s18, 1
      %s26 = ssub.s32 %s18, %s25
      %p27 = scmp.eq.s32.totalorder %s26, 0
      %s29 = sadd.s32 %s28, 1
      %s30 = scalar_select %p27, %s28, %s29
      %p33 = pneg %p27
      %p34 = scmp.eq.s32.totalorder %s18, 1
      %p35 = por %p33, %p34
      %p36 = scmp.ne.s32.totalorder %s28, %s31
      %p37 = scmp.eq.s32.totalorder %s18, 0
      %p38 = por %p36, %p37
      %p39 = scmp.ne.s32.totalorder %s28, %s31
      %p40 = scmp.eq.s32.totalorder %s23, 1
      %p41 = por %p39, %p40
      %p42 = scmp.ne.s32.totalorder %s31, %s32
      %p43 = scmp.eq.s32.totalorder %s23, 0
      %p44 = por %p42, %p43
      %p45 = scmp.ne.s32.totalorder %s31, %s32
      %p46 = scmp.eq.s32.totalorder %s24, 1
      %p47 = por %p45, %p46
      %p49 = scmp.ne.s32.totalorder %s32, %s48
      %p50 = scmp.eq.s32.totalorder %s24, 0
      %p51 = por %p49, %p50
      %s52 = ssub.s32 %s18, %s25
      %p53 = scmp.eq.s32.totalorder %s52, 0
      %s55 = sadd.s32 %s54, 1
      %s56 = scalar_select %p53, %s54, %s55
      %p59 = pneg %p53
      %p60 = scmp.eq.s32.totalorder %s18, 1
      %p61 = por %p59, %p60
      %p62 = scmp.ne.s32.totalorder %s54, %s57
      %p63 = scmp.eq.s32.totalorder %s18, 0
      %p64 = por %p62, %p63
      %p65 = scmp.ne.s32.totalorder %s54, %s57
      %p66 = scmp.eq.s32.totalorder %s23, 1
      %p67 = por %p65, %p66
      %p68 = scmp.ne.s32.totalorder %s57, %s58
      %p69 = scmp.eq.s32.totalorder %s23, 0
      %p70 = por %p68, %p69
      %p71 = scmp.ne.s32.totalorder %s57, %s58
      %p72 = scmp.eq.s32.totalorder %s24, 1
      %p73 = por %p71, %p72
      %p75 = scmp.ne.s32.totalorder %s58, %s74
      %p76 = scmp.eq.s32.totalorder %s24, 0
      %p77 = por %p75, %p76
      %p78 = scmp.le.s32.totalorder 1, %s18
      %p79 = scmp.lt.s32.totalorder %s18, 3
      %p80 = pnand %p78, %p79
      %p81 = pneg %p80
      // Predicated region
      $region9: #{tpu_custom_call.1} parent=5 // pred_check
        _
      $region10: #{tpu_custom_call.1} parent=5 // pred_check_branch
        %83 = sbr.rel (%p80) target = $region12
      $region11: #{tpu_custom_call.1} parent=5 // pred_region
        %s84 = ssub.s32 %s18, 1
      $region12: #{tpu_custom_call.1} parent=5 // pred_fallthru
        _
      %p85 = scmp.lt.s32.totalorder %s18, 2
      // Predicated region
      $region13: #{tpu_custom_call.1} parent=5 // pred_check
        %p86 = pneg %p85
      $region14: #{tpu_custom_call.1} parent=5 // pred_check_branch
        %88 = sbr.rel (%p86) target = $region16
      $region15: #{tpu_custom_call.1} parent=5 // pred_region
        // Predicated region
        $region17: #{tpu_custom_call.1} parent=15 // pred_check
          %p89 = pneg %p38
        $region18: #{tpu_custom_call.1} parent=15 // pred_check_branch
          %91 = sbr.rel (%p89) target = $region20
        $region19: #{tpu_custom_call.1} parent=15 // pred_region
          %s92 = sand.u32 %s28, 1
          %s93 = scalar_lea.sflag [#allocation6], %s92
          %s94 = sand.u32 %s28, 1
          %s95 = smul.addr %s94, 64
          %s96 = scalar_lea.vmem [#allocation5], %s95
          %s98 = ssub.s32 1024, 1024
          %99 = vsyncadd %s93, %s98
          %s100 = smul.addr %s18, 8
          %s101 = smul.addr %s100, 128
          %s102 = scalar_lea.hbm %s1, %s101
          %s103 = sshll.u32 %s96, 4
          %s104 = int_to_ptr.vmem [resolvable:$true] %s103
          %109 = dma.hbm_to_vmem [thread:$0]  %s102, 1024, %s104, %s93, 128, 128, 8
        $region20: #{tpu_custom_call.1} parent=15 // pred_fallthru
          _
      $region16: #{tpu_custom_call.1} parent=5 // pred_fallthru
        _
      %p110 = scmp.le.s32.totalorder 1, %s18
      %p111 = scmp.lt.s32.totalorder %s18, 3
      %p112 = pnand %p110, %p111
      %p113 = pneg %p112
      // Predicated region
      $region21: #{tpu_custom_call.1} parent=5 // pred_check
        _
      $region22: #{tpu_custom_call.1} parent=5 // pred_check_branch
        %115 = sbr.rel (%p112) target = $region24
      $region23: #{tpu_custom_call.1} parent=5 // pred_region
        %s116 = ssub.s32 %s18, 1
        %s117 = sand.u32 %s31, 1
        %s118 = scalar_lea.sflag [#allocation6], %s117
        %s119 = sand.u32 %s31, 1
        %s120 = smul.addr %s119, 64
        %s121 = scalar_lea.vmem [#allocation5], %s120
        // Predicated region
        $region25: #{tpu_custom_call.1} parent=23 // pred_check
          %p122 = pneg %p44
        $region26: #{tpu_custom_call.1} parent=23 // pred_check_branch
          %124 = sbr.rel (%p122) target = $region28
        $region27: #{tpu_custom_call.1} parent=23 // pred_region
          %125 = dma.done %s118, 1024
        $region28: #{tpu_custom_call.1} parent=23 // pred_fallthru
          _
        %s126 = sand.u32 %s31, 1
        %s127 = scalar_lea.sflag [#allocation6], %s126
        %s128 = sand.u32 %s31, 1
        %s129 = smul.addr %s128, 64
        %s130 = scalar_lea.vmem [#allocation5], %s129
        %p131 = pneg %p44
        %p132 = pneg %p41
        %p133 = pneg %p70
        %p134 = pneg %p67
        %s135 = sand.u32 %s57, 1
        %s136 = scalar_lea.sflag [#allocation7], %s135
        %s137 = sand.u32 %s57, 1
        %s138 = smul.addr %s137, 16
        %s139 = scalar_lea.vmem [#allocation8], %s138
        %v140 = vld [vmem:[%s121] sm:$0xff]
        %v141 = vld [vmem:[%s121 + $0x8] sm:$0xff]
        %s142 = scalar_lea.vmem %s121, 16 [#allocation5]
        %v143 = vld [vmem:[%s142] sm:$0xff]
        %v144 = vld [vmem:[%s142 + $0x8] sm:$0xff]
        %v145 = vadd.f32 %v140, %v143
        %v146 = vadd.f32 %v141, %v144
        %v147 = vmax.f32 %v140, %v143
        %v148 = vmax.f32 %v141, %v144
        %s149 = scalar_lea.vmem %s121, 32 [#allocation5]
        %v150 = vld [vmem:[%s149] sm:$0xff]
        %v151 = vld [vmem:[%s149 + $0x8] sm:$0xff]
        %v152 = vadd.f32 %v145, %v150
        %v153 = vadd.f32 %v146, %v151
        %v154 = vmax.f32 %v147, %v150
        %v155 = vmax.f32 %v148, %v151
        %s156 = scalar_lea.vmem %s121, 48 [#allocation5]
        %v157 = vld [vmem:[%s156] sm:$0xff]
        %v158 = vld [vmem:[%s156 + $0x8] sm:$0xff]
        %v159 = vadd.f32 %v152, %v157
        %v160 = vadd.f32 %v153, %v158
        %v161 = vmax.f32 %v154, %v157
        %v162 = vmax.f32 %v155, %v158
        %vm163 = vcmask 174080
        %164 = vst.msk [vmem:[#allocation2 + $0x5] sm:$0x7] %vm163, 0.0
        %165 = vst.msk [vmem:[#allocation2 + $0x25] sm:$0x7] %vm163, 0.0
        %166 = vst.msk [vmem:[#allocation2 + $0x18] sm:$0x7] %vm163, 0.0
        %167 = vst.msk [vmem:[#allocation2 + $0x38] sm:$0x7] %vm163, 0.0
        %vm168 = vcmask 23552
        %169 = vst.msk [vmem:[#allocation2 + $0x8] sm:$0xff] %vm168, 0.0
        %170 = vst.msk [vmem:[#allocation2 + $0x10] sm:$0xff] %vm168, 0.0
        %171 = vst.msk [vmem:[#allocation2 + $0x28] sm:$0xff] %vm168, 0.0
        %172 = vst.msk [vmem:[#allocation2 + $0x30] sm:$0xff] %vm168, 0.0
        %vm173 = vcmask 179352
        %174 = vst.msk [vmem:[#allocation2 + $0x8] sm:$0xff] %vm173, 0.0
        %175 = vst.msk [vmem:[#allocation2 + $0x10] sm:$0xff] %vm173, 0.0
        %176 = vst.msk [vmem:[#allocation2 + $0x28] sm:$0xff] %vm173, 0.0
        %177 = vst.msk [vmem:[#allocation2 + $0x30] sm:$0xff] %vm173, 0.0
        %180 = vrot.lane.b32.xlu0 %v159, 3
        %v181 = vpop.permute.xlu0 %180
        %182 = vrot.lane.b32.xlu0 %v160, 3
        %v183 = vpop.permute.xlu0 %182
        %vm186 = vcmask 154648
        %187 = vst.msk [vmem:[#allocation2 + $0x8] sm:$0xff] %vm186, %v181
        %188 = vst.msk [vmem:[#allocation2 + $0x10] sm:$0xff] %vm186, %v183
        %191 = vrot.lane.b32.xlu0 %v161, 3
        %v192 = vpop.permute.xlu0 %191
        %193 = vrot.lane.b32.xlu0 %v162, 3
        %v194 = vpop.permute.xlu0 %193
        %s197 = scalar_lea.vmem [#allocation2], 32
        %198 = vst.msk [vmem:[%s197 + $0x8] sm:$0xff] %vm186, %v192
        %199 = vst.msk [vmem:[%s197 + $0x10] sm:$0xff] %vm186, %v194
        %v200 = vld [vmem:[#allocation2 + $0x5] sm:$0xff]
        %v201 = vld [vmem:[#allocation2 + $0xd] sm:$0xff]
        %v202 = vld [vmem:[#allocation2 + $0x25] sm:$0xff]
        %v203 = vld [vmem:[#allocation2 + $0x2d] sm:$0xff]
        %s204 = sld [smem:[#allocation4]]
        %v205 = vstv %s204
        %v206 = vmul.f32 %v205, %v200
        %v207 = vmul.f32 %v205, %v201
        %s208 = sld [smem:[#allocation4 + $0x80]]
        %v209 = vstv %s208
        %v210 = vmul.f32 %v209, %v202
        %v211 = vmul.f32 %v209, %v203
        %v212 = vadd.f32 %v206, %v210
        %v213 = vadd.f32 %v207, %v211
        %s214 = sld [smem:[#allocation4 + $0x1]]
        %v215 = vstv %s214
        %v216 = vmul.f32 %v215, %v200
        %v217 = vmul.f32 %v215, %v201
        %s218 = sld [smem:[#allocation4 + $0x81]]
        %v219 = vstv %s218
        %v220 = vmul.f32 %v219, %v202
        %v221 = vmul.f32 %v219, %v203
        %v222 = vadd.f32 %v216, %v220
        %v223 = vadd.f32 %v217, %v221
        %226 = vrot.lane.b32.xlu0 %v222, 127
        %v227 = vpop.permute.xlu0 %226
        %228 = vrot.lane.b32.xlu0 %v223, 127
        %v229 = vpop.permute.xlu0 %228
        %v232 = vadd.f32 %v212, %v227
        %v233 = vadd.f32 %v213, %v229
        %s234 = sld [smem:[#allocation4 + $0x2]]
        %v235 = vstv %s234
        %v236 = vmul.f32 %v235, %v200
        %v237 = vmul.f32 %v235, %v201
        %s238 = sld [smem:[#allocation4 + $0x82]]
        %v239 = vstv %s238
        %v240 = vmul.f32 %v239, %v202
        %v241 = vmul.f32 %v239, %v203
        %v242 = vadd.f32 %v236, %v240
        %v243 = vadd.f32 %v237, %v241
        %246 = vrot.lane.b32.xlu0 %v242, 126
        %v247 = vpop.permute.xlu0 %246
        %248 = vrot.lane.b32.xlu0 %v243, 126
        %v249 = vpop.permute.xlu0 %248
        %v252 = vadd.f32 %v232, %v247
        %v253 = vadd.f32 %v233, %v249
        %s254 = sld [smem:[#allocation4 + $0x3]]
        %v255 = vstv %s254
        %v256 = vmul.f32 %v255, %v200
        %v257 = vmul.f32 %v255, %v201
        %s258 = sld [smem:[#allocation4 + $0x83]]
        %v259 = vstv %s258
        %v260 = vmul.f32 %v259, %v202
        %v261 = vmul.f32 %v259, %v203
        %v262 = vadd.f32 %v256, %v260
        %v263 = vadd.f32 %v257, %v261
        %266 = vrot.lane.b32.xlu0 %v262, 125
        %v267 = vpop.permute.xlu0 %266
        %268 = vrot.lane.b32.xlu0 %v263, 125
        %v269 = vpop.permute.xlu0 %268
        %v272 = vadd.f32 %v252, %v267
        %v273 = vadd.f32 %v253, %v269
        %s274 = sld [smem:[#allocation4 + $0x4]]
        %v275 = vstv %s274
        %v276 = vmul.f32 %v275, %v200
        %v277 = vmul.f32 %v275, %v201
        %s278 = sld [smem:[#allocation4 + $0x84]]
        %v279 = vstv %s278
        %v280 = vmul.f32 %v279, %v202
        %v281 = vmul.f32 %v279, %v203
        %v282 = vadd.f32 %v276, %v280
        %v283 = vadd.f32 %v277, %v281
        %286 = vrot.lane.b32.xlu0 %v282, 124
        %v287 = vpop.permute.xlu0 %286
        %288 = vrot.lane.b32.xlu0 %v283, 124
        %v289 = vpop.permute.xlu0 %288
        %v292 = vadd.f32 %v272, %v287
        %v293 = vadd.f32 %v273, %v289
        %s294 = sld [smem:[#allocation4 + $0x5]]
        %v295 = vstv %s294
        %v296 = vmul.f32 %v295, %v200
        %v297 = vmul.f32 %v295, %v201
        %s298 = sld [smem:[#allocation4 + $0x85]]
        %v299 = vstv %s298
        %v300 = vmul.f32 %v299, %v202
        %v301 = vmul.f32 %v299, %v203
        %v302 = vadd.f32 %v296, %v300
        %v303 = vadd.f32 %v297, %v301
        %306 = vrot.lane.b32.xlu0 %v302, 123
        %v307 = vpop.permute.xlu0 %306
        %308 = vrot.lane.b32.xlu0 %v303, 123
        %v309 = vpop.permute.xlu0 %308
        %v312 = vadd.f32 %v292, %v307
        %v313 = vadd.f32 %v293, %v309
        %s314 = sld [smem:[#allocation4 + $0x6]]
        %v315 = vstv %s314
        %v316 = vmul.f32 %v315, %v200
        %v317 = vmul.f32 %v315, %v201
        %s318 = sld [smem:[#allocation4 + $0x86]]
        %v319 = vstv %s318
        %v320 = vmul.f32 %v319, %v202
        %v321 = vmul.f32 %v319, %v203
        %v322 = vadd.f32 %v316, %v320
        %v323 = vadd.f32 %v317, %v321
        %326 = vrot.lane.b32.xlu0 %v322, 122
        %v327 = vpop.permute.xlu0 %326
        %328 = vrot.lane.b32.xlu0 %v323, 122
        %v329 = vpop.permute.xlu0 %328
        %v332 = vadd.f32 %v312, %v327
        %v333 = vadd.f32 %v313, %v329
        %v334 = vld [vmem:[#allocation2 + $0x6] sm:$0xff]
        %v335 = vld [vmem:[#allocation2 + $0xe] sm:$0xff]
        %v336 = vld [vmem:[#allocation2 + $0x26] sm:$0xff]
        %v337 = vld [vmem:[#allocation2 + $0x2e] sm:$0xff]
        %s338 = sld [smem:[#allocation4 + $0x7]]
        %v339 = vstv %s338
        %v340 = vmul.f32 %v339, %v334
        %v341 = vmul.f32 %v339, %v335
        %s342 = sld [smem:[#allocation4 + $0x87]]
        %v343 = vstv %s342
        %v344 = vmul.f32 %v343, %v336
        %v345 = vmul.f32 %v343, %v337
        %v346 = vadd.f32 %v340, %v344
        %v347 = vadd.f32 %v341, %v345
        %v348 = vadd.f32 %v332, %v346
        %v349 = vadd.f32 %v333, %v347
        %s350 = sld [smem:[#allocation4 + $0x8]]
        %v351 = vstv %s350
        %v352 = vmul.f32 %v351, %v334
        %v353 = vmul.f32 %v351, %v335
        %s354 = sld [smem:[#allocation4 + $0x88]]
        %v355 = vstv %s354
        %v356 = vmul.f32 %v355, %v336
        %v357 = vmul.f32 %v355, %v337
        %v358 = vadd.f32 %v352, %v356
        %v359 = vadd.f32 %v353, %v357
        %362 = vrot.lane.b32.xlu0 %v358, 127
        %v363 = vpop.permute.xlu0 %362
        %364 = vrot.lane.b32.xlu0 %v359, 127
        %v365 = vpop.permute.xlu0 %364
        %v368 = vadd.f32 %v348, %v363
        %v369 = vadd.f32 %v349, %v365
        %s370 = sld [smem:[#allocation4 + $0x9]]
        %v371 = vstv %s370
        %v372 = vmul.f32 %v371, %v334
        %v373 = vmul.f32 %v371, %v335
        %s374 = sld [smem:[#allocation4 + $0x89]]
        %v375 = vstv %s374
        %v376 = vmul.f32 %v375, %v336
        %v377 = vmul.f32 %v375, %v337
        %v378 = vadd.f32 %v372, %v376
        %v379 = vadd.f32 %v373, %v377
        %382 = vrot.lane.b32.xlu0 %v378, 126
        %v383 = vpop.permute.xlu0 %382
        %384 = vrot.lane.b32.xlu0 %v379, 126
        %v385 = vpop.permute.xlu0 %384
        %v388 = vadd.f32 %v368, %v383
        %v389 = vadd.f32 %v369, %v385
        %s390 = sld [smem:[#allocation4 + $0xa]]
        %v391 = vstv %s390
        %v392 = vmul.f32 %v391, %v334
        %v393 = vmul.f32 %v391, %v335
        %s394 = sld [smem:[#allocation4 + $0x8a]]
        %v395 = vstv %s394
        %v396 = vmul.f32 %v395, %v336
        %v397 = vmul.f32 %v395, %v337
        %v398 = vadd.f32 %v392, %v396
        %v399 = vadd.f32 %v393, %v397
        %402 = vrot.lane.b32.xlu0 %v398, 125
        %v403 = vpop.permute.xlu0 %402
        %404 = vrot.lane.b32.xlu0 %v399, 125
        %v405 = vpop.permute.xlu0 %404
        %v408 = vadd.f32 %v388, %v403
        %v409 = vadd.f32 %v389, %v405
        %s410 = sld [smem:[#allocation4 + $0xb]]
        %v411 = vstv %s410
        %v412 = vmul.f32 %v411, %v334
        %v413 = vmul.f32 %v411, %v335
        %s414 = sld [smem:[#allocation4 + $0x8b]]
        %v415 = vstv %s414
        %v416 = vmul.f32 %v415, %v336
        %v417 = vmul.f32 %v415, %v337
        %v418 = vadd.f32 %v412, %v416
        %v419 = vadd.f32 %v413, %v417
        %422 = vrot.lane.b32.xlu0 %v418, 124
        %v423 = vpop.permute.xlu0 %422
        %424 = vrot.lane.b32.xlu0 %v419, 124
        %v425 = vpop.permute.xlu0 %424
        %v428 = vadd.f32 %v408, %v423
        %v429 = vadd.f32 %v409, %v425
        %s430 = sld [smem:[#allocation4 + $0xc]]
        %v431 = vstv %s430
        %v432 = vmul.f32 %v431, %v334
        %v433 = vmul.f32 %v431, %v335
        %s434 = sld [smem:[#allocation4 + $0x8c]]
        %v435 = vstv %s434
        %v436 = vmul.f32 %v435, %v336
        %v437 = vmul.f32 %v435, %v337
        %v438 = vadd.f32 %v432, %v436
        %v439 = vadd.f32 %v433, %v437
        %442 = vrot.lane.b32.xlu0 %v438, 123
        %v443 = vpop.permute.xlu0 %442
        %444 = vrot.lane.b32.xlu0 %v439, 123
        %v445 = vpop.permute.xlu0 %444
        %v448 = vadd.f32 %v428, %v443
        %v449 = vadd.f32 %v429, %v445
        %s450 = sld [smem:[#allocation4 + $0xd]]
        %v451 = vstv %s450
        %v452 = vmul.f32 %v451, %v334
        %v453 = vmul.f32 %v451, %v335
        %s454 = sld [smem:[#allocation4 + $0x8d]]
        %v455 = vstv %s454
        %v456 = vmul.f32 %v455, %v336
        %v457 = vmul.f32 %v455, %v337
        %v458 = vadd.f32 %v452, %v456
        %v459 = vadd.f32 %v453, %v457
        %462 = vrot.lane.b32.xlu0 %v458, 122
        %v463 = vpop.permute.xlu0 %462
        %464 = vrot.lane.b32.xlu0 %v459, 122
        %v465 = vpop.permute.xlu0 %464
        %v468 = vadd.f32 %v448, %v463
        %v469 = vadd.f32 %v449, %v465
        %v470 = vld [vmem:[#allocation2 + $0x7] sm:$0xff]
        %v471 = vld [vmem:[#allocation2 + $0xf] sm:$0xff]
        %v472 = vld [vmem:[#allocation2 + $0x27] sm:$0xff]
        %v473 = vld [vmem:[#allocation2 + $0x2f] sm:$0xff]
        %s474 = sld [smem:[#allocation4 + $0xe]]
        %v475 = vstv %s474
        %v476 = vmul.f32 %v475, %v470
        %v477 = vmul.f32 %v475, %v471
        %s478 = sld [smem:[#allocation4 + $0x8e]]
        %v479 = vstv %s478
        %v480 = vmul.f32 %v479, %v472
        %v481 = vmul.f32 %v479, %v473
        %v482 = vadd.f32 %v476, %v480
        %v483 = vadd.f32 %v477, %v481
        %v484 = vadd.f32 %v468, %v482
        %v485 = vadd.f32 %v469, %v483
        %s486 = sld [smem:[#allocation4 + $0xf]]
        %v487 = vstv %s486
        %v488 = vmul.f32 %v487, %v470
        %v489 = vmul.f32 %v487, %v471
        %s490 = sld [smem:[#allocation4 + $0x8f]]
        %v491 = vstv %s490
        %v492 = vmul.f32 %v491, %v472
        %v493 = vmul.f32 %v491, %v473
        %v494 = vadd.f32 %v488, %v492
        %v495 = vadd.f32 %v489, %v493
        %498 = vrot.lane.b32.xlu0 %v494, 127
        %v499 = vpop.permute.xlu0 %498
        %500 = vrot.lane.b32.xlu0 %v495, 127
        %v501 = vpop.permute.xlu0 %500
        %v504 = vadd.f32 %v484, %v499
        %v505 = vadd.f32 %v485, %v501
        %s506 = sld [smem:[#allocation4 + $0x10]]
        %v507 = vstv %s506
        %v508 = vmul.f32 %v507, %v470
        %v509 = vmul.f32 %v507, %v471
        %s510 = sld [smem:[#allocation4 + $0x90]]
        %v511 = vstv %s510
        %v512 = vmul.f32 %v511, %v472
        %v513 = vmul.f32 %v511, %v473
        %v514 = vadd.f32 %v508, %v512
        %v515 = vadd.f32 %v509, %v513
        %518 = vrot.lane.b32.xlu0 %v514, 126
        %v519 = vpop.permute.xlu0 %518
        %520 = vrot.lane.b32.xlu0 %v515, 126
        %v521 = vpop.permute.xlu0 %520
        %v524 = vadd.f32 %v504, %v519
        %v525 = vadd.f32 %v505, %v521
        %s526 = sld [smem:[#allocation4 + $0x11]]
        %v527 = vstv %s526
        %v528 = vmul.f32 %v527, %v470
        %v529 = vmul.f32 %v527, %v471
        %s530 = sld [smem:[#allocation4 + $0x91]]
        %v531 = vstv %s530
        %v532 = vmul.f32 %v531, %v472
        %v533 = vmul.f32 %v531, %v473
        %v534 = vadd.f32 %v528, %v532
        %v535 = vadd.f32 %v529, %v533
        %538 = vrot.lane.b32.xlu0 %v534, 125
        %v539 = vpop.permute.xlu0 %538
        %540 = vrot.lane.b32.xlu0 %v535, 125
        %v541 = vpop.permute.xlu0 %540
        %v544 = vadd.f32 %v524, %v539
        %v545 = vadd.f32 %v525, %v541
        %s546 = sld [smem:[#allocation4 + $0x12]]
        %v547 = vstv %s546
        %v548 = vmul.f32 %v547, %v470
        %v549 = vmul.f32 %v547, %v471
        %s550 = sld [smem:[#allocation4 + $0x92]]
        %v551 = vstv %s550
        %v552 = vmul.f32 %v551, %v472
        %v553 = vmul.f32 %v551, %v473
        %v554 = vadd.f32 %v548, %v552
        %v555 = vadd.f32 %v549, %v553
        %558 = vrot.lane.b32.xlu0 %v554, 124
        %v559 = vpop.permute.xlu0 %558
        %560 = vrot.lane.b32.xlu0 %v555, 124
        %v561 = vpop.permute.xlu0 %560
        %v564 = vadd.f32 %v544, %v559
        %v565 = vadd.f32 %v545, %v561
        %s566 = sld [smem:[#allocation4 + $0x13]]
        %v567 = vstv %s566
        %v568 = vmul.f32 %v567, %v470
        %v569 = vmul.f32 %v567, %v471
        %s570 = sld [smem:[#allocation4 + $0x93]]
        %v571 = vstv %s570
        %v572 = vmul.f32 %v571, %v472
        %v573 = vmul.f32 %v571, %v473
        %v574 = vadd.f32 %v568, %v572
        %v575 = vadd.f32 %v569, %v573
        %578 = vrot.lane.b32.xlu0 %v574, 123
        %v579 = vpop.permute.xlu0 %578
        %580 = vrot.lane.b32.xlu0 %v575, 123
        %v581 = vpop.permute.xlu0 %580
        %v584 = vadd.f32 %v564, %v579
        %v585 = vadd.f32 %v565, %v581
        %s586 = sld [smem:[#allocation4 + $0x14]]
        %v587 = vstv %s586
        %v588 = vmul.f32 %v587, %v470
        %v589 = vmul.f32 %v587, %v471
        %s590 = sld [smem:[#allocation4 + $0x94]]
        %v591 = vstv %s590
        %v592 = vmul.f32 %v591, %v472
        %v593 = vmul.f32 %v591, %v473
        %v594 = vadd.f32 %v588, %v592
        %v595 = vadd.f32 %v589, %v593
        %598 = vrot.lane.b32.xlu0 %v594, 122
        %v599 = vpop.permute.xlu0 %598
        %600 = vrot.lane.b32.xlu0 %v595, 122
        %v601 = vpop.permute.xlu0 %600
        %v604 = vadd.f32 %v584, %v599
        %v605 = vadd.f32 %v585, %v601
        %v606 = vld [vmem:[#allocation2 + $0x8] sm:$0xff]
        %v607 = vld [vmem:[#allocation2 + $0x10] sm:$0xff]
        %v608 = vld [vmem:[#allocation2 + $0x28] sm:$0xff]
        %v609 = vld [vmem:[#allocation2 + $0x30] sm:$0xff]
        %s610 = sld [smem:[#allocation4 + $0x15]]
        %v611 = vstv %s610
        %v612 = vmul.f32 %v611, %v606
        %v613 = vmul.f32 %v611, %v607
        %s614 = sld [smem:[#allocation4 + $0x95]]
        %v615 = vstv %s614
        %v616 = vmul.f32 %v615, %v608
        %v617 = vmul.f32 %v615, %v609
        %v618 = vadd.f32 %v612, %v616
        %v619 = vadd.f32 %v613, %v617
        %v620 = vadd.f32 %v604, %v618
        %v621 = vadd.f32 %v605, %v619
        %s622 = sld [smem:[#allocation4 + $0x16]]
        %v623 = vstv %s622
        %v624 = vmul.f32 %v623, %v606
        %v625 = vmul.f32 %v623, %v607
        %s626 = sld [smem:[#allocation4 + $0x96]]
        %v627 = vstv %s626
        %v628 = vmul.f32 %v627, %v608
        %v629 = vmul.f32 %v627, %v609
        %v630 = vadd.f32 %v624, %v628
        %v631 = vadd.f32 %v625, %v629
        %634 = vrot.lane.b32.xlu0 %v630, 127
        %v635 = vpop.permute.xlu0 %634
        %636 = vrot.lane.b32.xlu0 %v631, 127
        %v637 = vpop.permute.xlu0 %636
        %v640 = vadd.f32 %v620, %v635
        %v641 = vadd.f32 %v621, %v637
        %s642 = sld [smem:[#allocation4 + $0x17]]
        %v643 = vstv %s642
        %v644 = vmul.f32 %v643, %v606
        %v645 = vmul.f32 %v643, %v607
        %s646 = sld [smem:[#allocation4 + $0x97]]
        %v647 = vstv %s646
        %v648 = vmul.f32 %v647, %v608
        %v649 = vmul.f32 %v647, %v609
        %v650 = vadd.f32 %v644, %v648
        %v651 = vadd.f32 %v645, %v649
        %654 = vrot.lane.b32.xlu0 %v650, 126
        %v655 = vpop.permute.xlu0 %654
        %656 = vrot.lane.b32.xlu0 %v651, 126
        %v657 = vpop.permute.xlu0 %656
        %v660 = vadd.f32 %v640, %v655
        %v661 = vadd.f32 %v641, %v657
        %s662 = sld [smem:[#allocation4 + $0x18]]
        %v663 = vstv %s662
        %v664 = vmul.f32 %v663, %v606
        %v665 = vmul.f32 %v663, %v607
        %s666 = sld [smem:[#allocation4 + $0x98]]
        %v667 = vstv %s666
        %v668 = vmul.f32 %v667, %v608
        %v669 = vmul.f32 %v667, %v609
        %v670 = vadd.f32 %v664, %v668
        %v671 = vadd.f32 %v665, %v669
        %674 = vrot.lane.b32.xlu0 %v670, 125
        %v675 = vpop.permute.xlu0 %674
        %676 = vrot.lane.b32.xlu0 %v671, 125
        %v677 = vpop.permute.xlu0 %676
        %v680 = vadd.f32 %v660, %v675
        %v681 = vadd.f32 %v661, %v677
        %s682 = sld [smem:[#allocation4 + $0x19]]
        %v683 = vstv %s682
        %v684 = vmul.f32 %v683, %v606
        %v685 = vmul.f32 %v683, %v607
        %s686 = sld [smem:[#allocation4 + $0x99]]
        %v687 = vstv %s686
        %v688 = vmul.f32 %v687, %v608
        %v689 = vmul.f32 %v687, %v609
        %v690 = vadd.f32 %v684, %v688
        %v691 = vadd.f32 %v685, %v689
        %694 = vrot.lane.b32.xlu0 %v690, 124
        %v695 = vpop.permute.xlu0 %694
        %696 = vrot.lane.b32.xlu0 %v691, 124
        %v697 = vpop.permute.xlu0 %696
        %v700 = vadd.f32 %v680, %v695
        %v701 = vadd.f32 %v681, %v697
        %s702 = sld [smem:[#allocation4 + $0x1a]]
        %v703 = vstv %s702
        %v704 = vmul.f32 %v703, %v606
        %v705 = vmul.f32 %v703, %v607
        %s706 = sld [smem:[#allocation4 + $0x9a]]
        %v707 = vstv %s706
        %v708 = vmul.f32 %v707, %v608
        %v709 = vmul.f32 %v707, %v609
        %v710 = vadd.f32 %v704, %v708
        %v711 = vadd.f32 %v705, %v709
        %714 = vrot.lane.b32.xlu0 %v710, 123
        %v715 = vpop.permute.xlu0 %714
        %716 = vrot.lane.b32.xlu0 %v711, 123
        %v717 = vpop.permute.xlu0 %716
        %v720 = vadd.f32 %v700, %v715
        %v721 = vadd.f32 %v701, %v717
        %s722 = sld [smem:[#allocation4 + $0x1b]]
        %v723 = vstv %s722
        %v724 = vmul.f32 %v723, %v606
        %v725 = vmul.f32 %v723, %v607
        %s726 = sld [smem:[#allocation4 + $0x9b]]
        %v727 = vstv %s726
        %v728 = vmul.f32 %v727, %v608
        %v729 = vmul.f32 %v727, %v609
        %v730 = vadd.f32 %v724, %v728
        %v731 = vadd.f32 %v725, %v729
        %734 = vrot.lane.b32.xlu0 %v730, 122
        %v735 = vpop.permute.xlu0 %734
        %736 = vrot.lane.b32.xlu0 %v731, 122
        %v737 = vpop.permute.xlu0 %736
        %v740 = vadd.f32 %v720, %v735
        %v741 = vadd.f32 %v721, %v737
        %v742 = vld [vmem:[#allocation2 + $0x9] sm:$0xff]
        %v743 = vld [vmem:[#allocation2 + $0x11] sm:$0xff]
        %v744 = vld [vmem:[#allocation2 + $0x29] sm:$0xff]
        %v745 = vld [vmem:[#allocation2 + $0x31] sm:$0xff]
        %s746 = sld [smem:[#allocation4 + $0x1c]]
        %v747 = vstv %s746
        %v748 = vmul.f32 %v747, %v742
        %v749 = vmul.f32 %v747, %v743
        %s750 = sld [smem:[#allocation4 + $0x9c]]
        %v751 = vstv %s750
        %v752 = vmul.f32 %v751, %v744
        %v753 = vmul.f32 %v751, %v745
        %v754 = vadd.f32 %v748, %v752
        %v755 = vadd.f32 %v749, %v753
        %v756 = vadd.f32 %v740, %v754
        %v757 = vadd.f32 %v741, %v755
        %s758 = sld [smem:[#allocation4 + $0x1d]]
        %v759 = vstv %s758
        %v760 = vmul.f32 %v759, %v742
        %v761 = vmul.f32 %v759, %v743
        %s762 = sld [smem:[#allocation4 + $0x9d]]
        %v763 = vstv %s762
        %v764 = vmul.f32 %v763, %v744
        %v765 = vmul.f32 %v763, %v745
        %v766 = vadd.f32 %v760, %v764
        %v767 = vadd.f32 %v761, %v765
        %770 = vrot.lane.b32.xlu0 %v766, 127
        %v771 = vpop.permute.xlu0 %770
        %772 = vrot.lane.b32.xlu0 %v767, 127
        %v773 = vpop.permute.xlu0 %772
        %v776 = vadd.f32 %v756, %v771
        %v777 = vadd.f32 %v757, %v773
        %s778 = sld [smem:[#allocation4 + $0x1e]]
        %v779 = vstv %s778
        %v780 = vmul.f32 %v779, %v742
        %v781 = vmul.f32 %v779, %v743
        %s782 = sld [smem:[#allocation4 + $0x9e]]
        %v783 = vstv %s782
        %v784 = vmul.f32 %v783, %v744
        %v785 = vmul.f32 %v783, %v745
        %v786 = vadd.f32 %v780, %v784
        %v787 = vadd.f32 %v781, %v785
        %790 = vrot.lane.b32.xlu0 %v786, 126
        %v791 = vpop.permute.xlu0 %790
        %792 = vrot.lane.b32.xlu0 %v787, 126
        %v793 = vpop.permute.xlu0 %792
        %v796 = vadd.f32 %v776, %v791
        %v797 = vadd.f32 %v777, %v793
        %s798 = sld [smem:[#allocation4 + $0x1f]]
        %v799 = vstv %s798
        %v800 = vmul.f32 %v799, %v742
        %v801 = vmul.f32 %v799, %v743
        %s802 = sld [smem:[#allocation4 + $0x9f]]
        %v803 = vstv %s802
        %v804 = vmul.f32 %v803, %v744
        %v805 = vmul.f32 %v803, %v745
        %v806 = vadd.f32 %v800, %v804
        %v807 = vadd.f32 %v801, %v805
        %810 = vrot.lane.b32.xlu0 %v806, 125
        %v811 = vpop.permute.xlu0 %810
        %812 = vrot.lane.b32.xlu0 %v807, 125
        %v813 = vpop.permute.xlu0 %812
        %v816 = vadd.f32 %v796, %v811
        %v817 = vadd.f32 %v797, %v813
        %s818 = sld [smem:[#allocation4 + $0x20]]
        %v819 = vstv %s818
        %v820 = vmul.f32 %v819, %v742
        %v821 = vmul.f32 %v819, %v743
        %s822 = sld [smem:[#allocation4 + $0xa0]]
        %v823 = vstv %s822
        %v824 = vmul.f32 %v823, %v744
        %v825 = vmul.f32 %v823, %v745
        %v826 = vadd.f32 %v820, %v824
        %v827 = vadd.f32 %v821, %v825
        %830 = vrot.lane.b32.xlu0 %v826, 124
        %v831 = vpop.permute.xlu0 %830
        %832 = vrot.lane.b32.xlu0 %v827, 124
        %v833 = vpop.permute.xlu0 %832
        %v836 = vadd.f32 %v816, %v831
        %v837 = vadd.f32 %v817, %v833
        %s838 = sld [smem:[#allocation4 + $0x21]]
        %v839 = vstv %s838
        %v840 = vmul.f32 %v839, %v742
        %v841 = vmul.f32 %v839, %v743
        %s842 = sld [smem:[#allocation4 + $0xa1]]
        %v843 = vstv %s842
        %v844 = vmul.f32 %v843, %v744
        %v845 = vmul.f32 %v843, %v745
        %v846 = vadd.f32 %v840, %v844
        %v847 = vadd.f32 %v841, %v845
        %850 = vrot.lane.b32.xlu0 %v846, 123
        %v851 = vpop.permute.xlu0 %850
        %852 = vrot.lane.b32.xlu0 %v847, 123
        %v853 = vpop.permute.xlu0 %852
        %v856 = vadd.f32 %v836, %v851
        %v857 = vadd.f32 %v837, %v853
        %s858 = sld [smem:[#allocation4 + $0x22]]
        %v859 = vstv %s858
        %v860 = vmul.f32 %v859, %v742
        %v861 = vmul.f32 %v859, %v743
        %s862 = sld [smem:[#allocation4 + $0xa2]]
        %v863 = vstv %s862
        %v864 = vmul.f32 %v863, %v744
        %v865 = vmul.f32 %v863, %v745
        %v866 = vadd.f32 %v860, %v864
        %v867 = vadd.f32 %v861, %v865
        %870 = vrot.lane.b32.xlu0 %v866, 122
        %v871 = vpop.permute.xlu0 %870
        %872 = vrot.lane.b32.xlu0 %v867, 122
        %v873 = vpop.permute.xlu0 %872
        %v876 = vadd.f32 %v856, %v871
        %v877 = vadd.f32 %v857, %v873
        %v878 = vld [vmem:[#allocation2 + $0xa] sm:$0xff]
        %v879 = vld [vmem:[#allocation2 + $0x12] sm:$0xff]
        %v880 = vld [vmem:[#allocation2 + $0x2a] sm:$0xff]
        %v881 = vld [vmem:[#allocation2 + $0x32] sm:$0xff]
        %s882 = sld [smem:[#allocation4 + $0x23]]
        %v883 = vstv %s882
        %v884 = vmul.f32 %v883, %v878
        %v885 = vmul.f32 %v883, %v879
        %s886 = sld [smem:[#allocation4 + $0xa3]]
        %v887 = vstv %s886
        %v888 = vmul.f32 %v887, %v880
        %v889 = vmul.f32 %v887, %v881
        %v890 = vadd.f32 %v884, %v888
        %v891 = vadd.f32 %v885, %v889
        %v892 = vadd.f32 %v876, %v890
        %v893 = vadd.f32 %v877, %v891
        %s894 = sld [smem:[#allocation4 + $0x24]]
        %v895 = vstv %s894
        %v896 = vmul.f32 %v895, %v878
        %v897 = vmul.f32 %v895, %v879
        %s898 = sld [smem:[#allocation4 + $0xa4]]
        %v899 = vstv %s898
        %v900 = vmul.f32 %v899, %v880
        %v901 = vmul.f32 %v899, %v881
        %v902 = vadd.f32 %v896, %v900
        %v903 = vadd.f32 %v897, %v901
        %906 = vrot.lane.b32.xlu0 %v902, 127
        %v907 = vpop.permute.xlu0 %906
        %908 = vrot.lane.b32.xlu0 %v903, 127
        %v909 = vpop.permute.xlu0 %908
        %v912 = vadd.f32 %v892, %v907
        %v913 = vadd.f32 %v893, %v909
        %s914 = sld [smem:[#allocation4 + $0x25]]
        %v915 = vstv %s914
        %v916 = vmul.f32 %v915, %v878
        %v917 = vmul.f32 %v915, %v879
        %s918 = sld [smem:[#allocation4 + $0xa5]]
        %v919 = vstv %s918
        %v920 = vmul.f32 %v919, %v880
        %v921 = vmul.f32 %v919, %v881
        %v922 = vadd.f32 %v916, %v920
        %v923 = vadd.f32 %v917, %v921
        %926 = vrot.lane.b32.xlu0 %v922, 126
        %v927 = vpop.permute.xlu0 %926
        %928 = vrot.lane.b32.xlu0 %v923, 126
        %v929 = vpop.permute.xlu0 %928
        %v932 = vadd.f32 %v912, %v927
        %v933 = vadd.f32 %v913, %v929
        %s934 = sld [smem:[#allocation4 + $0x26]]
        %v935 = vstv %s934
        %v936 = vmul.f32 %v935, %v878
        %v937 = vmul.f32 %v935, %v879
        %s938 = sld [smem:[#allocation4 + $0xa6]]
        %v939 = vstv %s938
        %v940 = vmul.f32 %v939, %v880
        %v941 = vmul.f32 %v939, %v881
        %v942 = vadd.f32 %v936, %v940
        %v943 = vadd.f32 %v937, %v941
        %946 = vrot.lane.b32.xlu0 %v942, 125
        %v947 = vpop.permute.xlu0 %946
        %948 = vrot.lane.b32.xlu0 %v943, 125
        %v949 = vpop.permute.xlu0 %948
        %v952 = vadd.f32 %v932, %v947
        %v953 = vadd.f32 %v933, %v949
        %s954 = sld [smem:[#allocation4 + $0x27]]
        %v955 = vstv %s954
        %v956 = vmul.f32 %v955, %v878
        %v957 = vmul.f32 %v955, %v879
        %s958 = sld [smem:[#allocation4 + $0xa7]]
        %v959 = vstv %s958
        %v960 = vmul.f32 %v959, %v880
        %v961 = vmul.f32 %v959, %v881
        %v962 = vadd.f32 %v956, %v960
        %v963 = vadd.f32 %v957, %v961
        %966 = vrot.lane.b32.xlu0 %v962, 124
        %v967 = vpop.permute.xlu0 %966
        %968 = vrot.lane.b32.xlu0 %v963, 124
        %v969 = vpop.permute.xlu0 %968
        %v972 = vadd.f32 %v952, %v967
        %v973 = vadd.f32 %v953, %v969
        %s974 = sld [smem:[#allocation4 + $0x28]]
        %v975 = vstv %s974
        %v976 = vmul.f32 %v975, %v878
        %v977 = vmul.f32 %v975, %v879
        %s978 = sld [smem:[#allocation4 + $0xa8]]
        %v979 = vstv %s978
        %v980 = vmul.f32 %v979, %v880
        %v981 = vmul.f32 %v979, %v881
        %v982 = vadd.f32 %v976, %v980
        %v983 = vadd.f32 %v977, %v981
        %986 = vrot.lane.b32.xlu0 %v982, 123
        %v987 = vpop.permute.xlu0 %986
        %988 = vrot.lane.b32.xlu0 %v983, 123
        %v989 = vpop.permute.xlu0 %988
        %v992 = vadd.f32 %v972, %v987
        %v993 = vadd.f32 %v973, %v989
        %s994 = sld [smem:[#allocation4 + $0x29]]
        %v995 = vstv %s994
        %v996 = vmul.f32 %v995, %v878
        %v997 = vmul.f32 %v995, %v879
        %s998 = sld [smem:[#allocation4 + $0xa9]]
        %v999 = vstv %s998
        %v1000 = vmul.f32 %v999, %v880
        %v1001 = vmul.f32 %v999, %v881
        %v1002 = vadd.f32 %v996, %v1000
        %v1003 = vadd.f32 %v997, %v1001
        %1006 = vrot.lane.b32.xlu0 %v1002, 122
        %v1007 = vpop.permute.xlu0 %1006
        %1008 = vrot.lane.b32.xlu0 %v1003, 122
        %v1009 = vpop.permute.xlu0 %1008
        %v1012 = vadd.f32 %v992, %v1007
        %v1013 = vadd.f32 %v993, %v1009
        %v1014 = vld [vmem:[#allocation2 + $0xb] sm:$0xff]
        %v1015 = vld [vmem:[#allocation2 + $0x13] sm:$0xff]
        %v1016 = vld [vmem:[#allocation2 + $0x2b] sm:$0xff]
        %v1017 = vld [vmem:[#allocation2 + $0x33] sm:$0xff]
        %s1018 = sld [smem:[#allocation4 + $0x2a]]
        %v1019 = vstv %s1018
        %v1020 = vmul.f32 %v1019, %v1014
        %v1021 = vmul.f32 %v1019, %v1015
        %s1022 = sld [smem:[#allocation4 + $0xaa]]
        %v1023 = vstv %s1022
        %v1024 = vmul.f32 %v1023, %v1016
        %v1025 = vmul.f32 %v1023, %v1017
        %v1026 = vadd.f32 %v1020, %v1024
        %v1027 = vadd.f32 %v1021, %v1025
        %v1028 = vadd.f32 %v1012, %v1026
        %v1029 = vadd.f32 %v1013, %v1027
        %s1030 = sld [smem:[#allocation4 + $0x2b]]
        %v1031 = vstv %s1030
        %v1032 = vmul.f32 %v1031, %v1014
        %v1033 = vmul.f32 %v1031, %v1015
        %s1034 = sld [smem:[#allocation4 + $0xab]]
        %v1035 = vstv %s1034
        %v1036 = vmul.f32 %v1035, %v1016
        %v1037 = vmul.f32 %v1035, %v1017
        %v1038 = vadd.f32 %v1032, %v1036
        %v1039 = vadd.f32 %v1033, %v1037
        %1042 = vrot.lane.b32.xlu0 %v1038, 127
        %v1043 = vpop.permute.xlu0 %1042
        %1044 = vrot.lane.b32.xlu0 %v1039, 127
        %v1045 = vpop.permute.xlu0 %1044
        %v1048 = vadd.f32 %v1028, %v1043
        %v1049 = vadd.f32 %v1029, %v1045
        %s1050 = sld [smem:[#allocation4 + $0x2c]]
        %v1051 = vstv %s1050
        %v1052 = vmul.f32 %v1051, %v1014
        %v1053 = vmul.f32 %v1051, %v1015
        %s1054 = sld [smem:[#allocation4 + $0xac]]
        %v1055 = vstv %s1054
        %v1056 = vmul.f32 %v1055, %v1016
        %v1057 = vmul.f32 %v1055, %v1017
        %v1058 = vadd.f32 %v1052, %v1056
        %v1059 = vadd.f32 %v1053, %v1057
        %1062 = vrot.lane.b32.xlu0 %v1058, 126
        %v1063 = vpop.permute.xlu0 %1062
        %1064 = vrot.lane.b32.xlu0 %v1059, 126
        %v1065 = vpop.permute.xlu0 %1064
        %v1068 = vadd.f32 %v1048, %v1063
        %v1069 = vadd.f32 %v1049, %v1065
        %s1070 = sld [smem:[#allocation4 + $0x2d]]
        %v1071 = vstv %s1070
        %v1072 = vmul.f32 %v1071, %v1014
        %v1073 = vmul.f32 %v1071, %v1015
        %s1074 = sld [smem:[#allocation4 + $0xad]]
        %v1075 = vstv %s1074
        %v1076 = vmul.f32 %v1075, %v1016
        %v1077 = vmul.f32 %v1075, %v1017
        %v1078 = vadd.f32 %v1072, %v1076
        %v1079 = vadd.f32 %v1073, %v1077
        %1082 = vrot.lane.b32.xlu0 %v1078, 125
        %v1083 = vpop.permute.xlu0 %1082
        %1084 = vrot.lane.b32.xlu0 %v1079, 125
        %v1085 = vpop.permute.xlu0 %1084
        %v1088 = vadd.f32 %v1068, %v1083
        %v1089 = vadd.f32 %v1069, %v1085
        %s1090 = sld [smem:[#allocation4 + $0x2e]]
        %v1091 = vstv %s1090
        %v1092 = vmul.f32 %v1091, %v1014
        %v1093 = vmul.f32 %v1091, %v1015
        %s1094 = sld [smem:[#allocation4 + $0xae]]
        %v1095 = vstv %s1094
        %v1096 = vmul.f32 %v1095, %v1016
        %v1097 = vmul.f32 %v1095, %v1017
        %v1098 = vadd.f32 %v1092, %v1096
        %v1099 = vadd.f32 %v1093, %v1097
        %1102 = vrot.lane.b32.xlu0 %v1098, 124
        %v1103 = vpop.permute.xlu0 %1102
        %1104 = vrot.lane.b32.xlu0 %v1099, 124
        %v1105 = vpop.permute.xlu0 %1104
        %v1108 = vadd.f32 %v1088, %v1103
        %v1109 = vadd.f32 %v1089, %v1105
        %s1110 = sld [smem:[#allocation4 + $0x2f]]
        %v1111 = vstv %s1110
        %v1112 = vmul.f32 %v1111, %v1014
        %v1113 = vmul.f32 %v1111, %v1015
        %s1114 = sld [smem:[#allocation4 + $0xaf]]
        %v1115 = vstv %s1114
        %v1116 = vmul.f32 %v1115, %v1016
        %v1117 = vmul.f32 %v1115, %v1017
        %v1118 = vadd.f32 %v1112, %v1116
        %v1119 = vadd.f32 %v1113, %v1117
        %1122 = vrot.lane.b32.xlu0 %v1118, 123
        %v1123 = vpop.permute.xlu0 %1122
        %1124 = vrot.lane.b32.xlu0 %v1119, 123
        %v1125 = vpop.permute.xlu0 %1124
        %v1128 = vadd.f32 %v1108, %v1123
        %v1129 = vadd.f32 %v1109, %v1125
        %s1130 = sld [smem:[#allocation4 + $0x30]]
        %v1131 = vstv %s1130
        %v1132 = vmul.f32 %v1131, %v1014
        %v1133 = vmul.f32 %v1131, %v1015
        %s1134 = sld [smem:[#allocation4 + $0xb0]]
        %v1135 = vstv %s1134
        %v1136 = vmul.f32 %v1135, %v1016
        %v1137 = vmul.f32 %v1135, %v1017
        %v1138 = vadd.f32 %v1132, %v1136
        %v1139 = vadd.f32 %v1133, %v1137
        %1142 = vrot.lane.b32.xlu0 %v1138, 122
        %v1143 = vpop.permute.xlu0 %1142
        %1144 = vrot.lane.b32.xlu0 %v1139, 122
        %v1145 = vpop.permute.xlu0 %1144
        %v1148 = vadd.f32 %v1128, %v1143
        %v1149 = vadd.f32 %v1129, %v1145
        %v1150 = vxor.u32 %v1148, 2147483648
        %v1151 = vxor.u32 %v1149, 2147483648
        %v1152 = vmul.f32 %v1150, 1.442695
        %v1153 = vpow.pop %v1152
        %v1154 = vmul.f32 %v1151, 1.442695
        %v1155 = vpow.pop %v1154
        %v1156 = vadd.f32 %v1153, 1.0
        %v1157 = vadd.f32 %v1155, 1.0
        %v1158 = vrcp.pop %v1156
        %v1159 = vmul.f32 1.0, %v1158
        %v1160 = vrcp.pop %v1157
        %v1161 = vmul.f32 1.0, %v1160
        %vm1162 = vcmask 130048
        %1163 = vst.msk [vmem:[%s139] sm:$0xff] %vm1162, %v1159
        %1164 = vst.msk [vmem:[%s139 + $0x8] sm:$0xff] %vm1162, %v1161
        %s1165 = sand.u32 %s57, 1
        %s1166 = scalar_lea.sflag [#allocation7], %s1165
        %s1167 = sand.u32 %s57, 1
        %s1168 = smul.addr %s1167, 16
        %s1169 = scalar_lea.vmem [#allocation8], %s1168
        // Predicated region
        $region29: #{tpu_custom_call.1} parent=23 // pred_check
          %p1170 = pneg %p67
        $region30: #{tpu_custom_call.1} parent=23 // pred_check_branch
          %1172 = sbr.rel (%p1170) target = $region32
        $region31: #{tpu_custom_call.1} parent=23 // pred_region
          %s1174 = ssub.s32 256, 256
          %1175 = vsyncadd %s1166, %s1174
          %s1176 = smul.addr %s23, 2
          %s1177 = smul.addr %s1176, 128
          %s1178 = scalar_lea.hbm %s2, %s1177
          %s1179 = sshll.u32 %s1169, 4
          %s1180 = int_to_ptr.vmem [resolvable:$true] %s1179
          %1185 = dma.vmem_to_hbm [thread:$0]  %s1180, 256, %s1178, %s1166, 128, 128, 8
        $region32: #{tpu_custom_call.1} parent=23 // pred_fallthru
          _
      $region24: #{tpu_custom_call.1} parent=5 // pred_fallthru
        _
      %p1186 = scmp.le.s32.totalorder 2, %s18
      // Predicated region
      $region33: #{tpu_custom_call.1} parent=5 // pred_check
        %p1187 = pneg %p1186
      $region34: #{tpu_custom_call.1} parent=5 // pred_check_branch
        %1189 = sbr.rel (%p1187) target = $region36
      $region35: #{tpu_custom_call.1} parent=5 // pred_region
        %s1190 = ssub.s32 %s18, 2
        // Predicated region
        $region37: #{tpu_custom_call.1} parent=35 // pred_check
          %p1191 = pneg %p73
        $region38: #{tpu_custom_call.1} parent=35 // pred_check_branch
          %1193 = sbr.rel (%p1191) target = $region40
        $region39: #{tpu_custom_call.1} parent=35 // pred_region
          %s1194 = sand.u32 %s58, 1
          %s1195 = scalar_lea.sflag [#allocation7], %s1194
          %s1196 = sand.u32 %s58, 1
          %s1197 = smul.addr %s1196, 16
          %s1198 = scalar_lea.vmem [#allocation8], %s1197
          %1199 = dma.done %s1195, 256
        $region40: #{tpu_custom_call.1} parent=35 // pred_fallthru
          _
      $region36: #{tpu_custom_call.1} parent=5 // pred_fallthru
        _
    $region6: #{tpu_custom_call.1} parent=1 // loop_footer
      %s22 = sadd.s32 1, %s18
    $region7: #{tpu_custom_call.1} parent=1 // loop_footer_branch
      %17 = sbr.rel target = $region3
    $region8: #{tpu_custom_call.1} parent=1 // loop_exit
      _
    %1200 = vsyncpa [#allocation6], 1
    %s1201 = scalar_lea.sflag [#allocation6], 1
    %1202 = vsyncpa %s1201, 1
    %1203 = vsyncpa [#allocation7], 1
    %s1204 = scalar_lea.sflag [#allocation7], 1
    %1205 = vsyncpa %s1204, 1

</llo_original>
